<compile_context>
chip_gen: v7x
topology: tpu7x:2x2x1
jax: 0.10.0
libtpu: 0.0.40
codegen_flags: <defaults>
</compile_context>

<pallas_src>
import numpy as np

import jax
import jax.numpy as jnp
from jax.experimental import pallas as pl
from jax.experimental.pallas import tpu as pltpu


# ----------------------------- fused Pallas kernel ---------------------------

def _net_kernel(xe_ref, xo_ref, band1_ref, b1r_ref, band2_ref, b2r_ref,
                fw1_ref, fb1_ref, fw2_ref, fb2_ref, o_ref):
    """One grid step = BT images, batch-minor rows (row = spatial_row*BT + b)."""
    f32, bf16 = jnp.float32, jnp.bfloat16
    bt = o_ref.shape[0]

    # ---- conv1: two banded MXU matmuls (even / odd conv-output rows) -------
    # band1 lanes: [0:128) = even output columns, [128:256) = odd, both already
    # arranged as pooled_w*10 + channel (padding lanes are zero).
    ye = jnp.dot(xe_ref[...].astype(bf16), band1_ref[...],
                 preferred_element_type=f32)                     # [12*bt, 256]
    yo = jnp.dot(xo_ref[...].astype(bf16), band1_ref[...],
                 preferred_element_type=f32)                     # [12*bt, 256]

    # ---- maxpool 2x2 + bias + ReLU, all elementwise -------------------------
    hmax = jnp.maximum(ye, yo)                                   # pool over H
    wmax = jnp.maximum(hmax[:, :128], hmax[:, 128:])             # pool over W
    h1 = jnp.maximum(wmax + b1r_ref[...], 0.0)                   # [12*bt, 128]

    # ---- conv2: ky-stacked im2col along lanes -> single MXU matmul ----------
    lhs2 = jnp.concatenate(
        [h1[ky * bt:(ky + 8) * bt, :].astype(bf16) for ky in range(5)], axis=1)
    acc2 = jnp.dot(lhs2, band2_ref[...], preferred_element_type=f32)  # [8*bt, 256]

    # ---- maxpool 2x2 + bias + ReLU (same parity tricks), flatten for fc1 ----
    wmax2 = jnp.maximum(acc2[:, :128], acc2[:, 128:])            # [8*bt, 128]
    pooled = []
    for h in range(4):                                           # pool over H (aligned row blocks)
        r = jnp.maximum(wmax2[(2 * h) * bt:(2 * h + 1) * bt, :],
                        wmax2[(2 * h + 1) * bt:(2 * h + 2) * bt, :])
        pooled.append(jnp.maximum(r + b2r_ref[...], 0.0).astype(bf16))
    h2 = jnp.concatenate(pooled, axis=1)                         # [bt, 512]

    # ---- fc1 (+ReLU) and fc2, chained without leaving VMEM ------------------
    h3 = jnp.maximum(jnp.dot(h2, fw1_ref[...], preferred_element_type=f32)
                     + fb1_ref[...], 0.0)                        # [bt, 64]
    o_ref[...] = jnp.dot(h3.astype(bf16), fw2_ref[...],
                         preferred_element_type=f32) + fb2_ref[...]   # lane-dense


# ------------------------- parameter init / hoisted prep ---------------------

def init_params(key):
    """Parameters in torch layouts (Conv2d: [Cout,Cin,kh,kw], Linear: [out,in])."""
    ks = jax.random.split(key, 8)
    s = lambda fan_in: 1.0 / np.sqrt(fan_in)
    w1 = jax.random.normal(ks[0], (10, 1, 5, 5), jnp.float32) * s(25)
    b1 = jax.random.normal(ks[1], (10,), jnp.float32) * s(25)
    w2 = jax.random.normal(ks[2], (20, 10, 5, 5), jnp.float32) * s(250)
    b2 = jax.random.normal(ks[3], (20,), jnp.float32) * s(250)
    fw1 = jax.random.normal(ks[4], (50, 320), jnp.float32) * s(320)
    fb1 = jax.random.normal(ks[5], (50,), jnp.float32) * s(320)
    fw2 = jax.random.normal(ks[6], (10, 50), jnp.float32) * s(50)
    fb2 = jax.random.normal(ks[7], (10,), jnp.float32) * s(50)
    return (w1, b1, w2, b2, fw1, fb1, fw2, fb2)


def prepare_params(params):
    """One-time weight prepack (hoisted out of the forward path).

    Conv output column convention: lanes [0:128) hold even output columns,
    lanes [128:256) odd ones, both indexed pooled_col*C + channel, so the 2x2
    W-pool is a max of two aligned 128-lane halves.  Padding lanes are zero.
    """
    w1, b1, w2, b2, fw1, fb1, fw2, fb2 = [np.asarray(p, np.float32) for p in params]

    # conv1 banded weights [140, 256]: row = ky*28 + iw (iw = ow + kx);
    # w1[c,0,ky,kx] -> lane (ow//2)*10 + c (+128 if ow odd).
    band1 = np.zeros((140, 256), np.float32)
    for ky in range(5):
        for kx in range(5):
            for ow in range(24):
                col = (ow // 2) * 10 + (128 if ow % 2 else 0)
                band1[ky * 28 + ow + kx, col:col + 10] = w1[:, 0, ky, kx]
    b1row = np.zeros((1, 128), np.float32)
    for w in range(12):
        b1row[0, w * 10:w * 10 + 10] = b1

    # conv2 banded weights [640, 256]: row = ky*128 + iw*10 + ci (iw = ow + kx);
    # w2[co,ci,ky,kx] -> lane (ow//2)*20 + co (+128 if ow odd).
    band2 = np.zeros((5, 128, 256), np.float32)
    for ky in range(5):
        for kx in range(5):
            for ow in range(8):
                iw = ow + kx
                col = (ow // 2) * 20 + (128 if ow % 2 else 0)
                band2[ky, iw * 10:iw * 10 + 10, col:col + 20] = w2[:, :, ky, kx].T
    band2 = band2.reshape(640, 256)
    b2row = np.zeros((1, 128), np.float32)
    for w in range(4):
        b2row[0, w * 20:w * 20 + 20] = b2

    # fc1 [512, 64]: kernel flatten order is (pooled_h)*128 + pooled_w*20 + co;
    # torch flatten order is co*16 + h*4 + w.
    fw1p = np.zeros((512, 64), np.float32)
    for h in range(4):
        for w in range(4):
            for co in range(20):
                fw1p[h * 128 + w * 20 + co, :50] = fw1[:, co * 16 + h * 4 + w]
    fb1row = np.zeros((1, 64), np.float32)
    fb1row[0, :50] = fb1

    # fc2 [64, 128], zero-padded so the kernel's HBM store is lane-dense.
    fw2p = np.zeros((64, 128), np.float32)
    fw2p[:50, :10] = fw2.T
    fb2row = np.zeros((1, 128), np.float32)
    fb2row[0, :10] = fb2

    bf = jnp.bfloat16
    return (jnp.asarray(band1, bf), jnp.asarray(b1row),
            jnp.asarray(band2, bf), jnp.asarray(b2row),
            jnp.asarray(fw1p, bf), jnp.asarray(fb1row),
            jnp.asarray(fw2p, bf), jnp.asarray(fb2row))


# ------------------------------- forward --------------------------------------

def _round_up(x, m):
    return (x + m - 1) // m * m


def net_forward(x_nchw, prep, *, max_batch_tile=64):
    band1, b1row, band2, b2row, fw1p, fb1row, fw2p, fb2row = prep
    B = x_nchw.shape[0]
    x2d = x_nchw.reshape(B, 28, 28).astype(jnp.float32)        # Cin == 1

    bt = min(max_batch_tile, _round_up(B, 8))                  # images per step (mult of 8)
    bp = _round_up(B, bt)
    if bp != B:
        x2d = jnp.pad(x2d, ((0, bp - B), (0, 0), (0, 0)))
    nt = bp // bt

    # Input staging (layout plumbing only): ky-stacked im2col rows split by
    # conv-output-row parity, batch-minor inside each tile:
    #   x{e,o}[t, h*bt + b, ky*28 + w] = image[t*bt + b, 2h(+1) + ky, w]
    xe = jnp.concatenate([x2d[:, ky:ky + 24:2, :] for ky in range(5)], axis=-1)
    xo = jnp.concatenate([x2d[:, ky + 1:ky + 25:2, :] for ky in range(5)], axis=-1)

    def tile_rows(a):                       # [bp, 12, 140] -> [nt, 12*bt, 140]
        a = a.reshape(nt, bt, 12, 140)
        return jnp.transpose(a, (0, 2, 1, 3)).reshape(nt, 12 * bt, 140)

    xe, xo = tile_rows(xe), tile_rows(xo)

    out = pl.pallas_call(
        _net_kernel,
        out_shape=jax.ShapeDtypeStruct((bp, 128), jnp.float32),
        grid=(nt,),
        in_specs=[
            pl.BlockSpec((None, 12 * bt, 140), lambda i: (i, 0, 0)),   # even rows
            pl.BlockSpec((None, 12 * bt, 140), lambda i: (i, 0, 0)),   # odd rows
            pl.BlockSpec((140, 256), lambda i: (0, 0)),                # conv1 bands
            pl.BlockSpec((1, 128), lambda i: (0, 0)),                  # b1 (tiled)
            pl.BlockSpec((640, 256), lambda i: (0, 0)),                # conv2 bands
            pl.BlockSpec((1, 128), lambda i: (0, 0)),                  # b2 (tiled)
            pl.BlockSpec((512, 64), lambda i: (0, 0)),                 # fc1 (perm)
            pl.BlockSpec((1, 64), lambda i: (0, 0)),                   # fb1
            pl.BlockSpec((64, 128), lambda i: (0, 0)),                 # fc2 (pad)
            pl.BlockSpec((1, 128), lambda i: (0, 0)),                  # fb2 (pad)
        ],
        out_specs=pl.BlockSpec((bt, 128), lambda i: (i, 0)),
        compiler_params=pltpu.CompilerParams(
            dimension_semantics=("parallel",)),
    )(xe, xo, band1, b1row, band2, b2row, fw1p, fb1row, fw2p, fb2row)

    return out[:B, :10]


# -------------------------- pure-JAX reference --------------------------------

def _reference_forward(x_nchw, params):
    """Plain XLA reference with exact torch.Net semantics (f32)."""
    w1, b1, w2, b2, fw1, fb1, fw2, fb2 = params

    def conv5(x, w, b):                     # x: [B,Ci,H,W], w: [Co,Ci,5,5]
        H, W = x.shape[2], x.shape[3]
        out = 0.0
        for ky in range(5):
            for kx in range(5):
                patch = x[:, :, ky:ky + H - 4, kx:kx + W - 4]
                out = out + jnp.einsum('bchw,oc->bohw', patch, w[:, :, ky, kx])
        return out + b[None, :, None, None]

    def pool2(x):
        return jnp.maximum(jnp.maximum(x[:, :, 0::2, 0::2], x[:, :, 0::2, 1::2]),
                           jnp.maximum(x[:, :, 1::2, 0::2], x[:, :, 1::2, 1::2]))

    y = jnp.maximum(pool2(conv5(x_nchw, w1, b1)), 0.0)
    y = jnp.maximum(pool2(conv5(y, w2, b2)), 0.0)
    y = y.reshape(x_nchw.shape[0], 320)
    y = jnp.maximum(y @ fw1.T + fb1, 0.0)
    return y @ fw2.T + fb2


if __name__ == "__main__":
    key = jax.random.PRNGKey(0)
    k_param, k_x = jax.random.split(key)
    params = init_params(k_param)
    prep = prepare_params(params)            # hoisted one-time weight prepack

    # Net's geometry (fc1 = 20*4*4) implies 1x28x28 inputs; batch = 2.
    x = jax.random.normal(k_x, (2, 1, 28, 28), jnp.float32)

    fwd = jax.jit(lambda xx: net_forward(xx, prep))
    out = fwd(x)
    jax.block_until_ready(out)

    assert out.shape == (2, 10) and out.dtype == jnp.float32
    assert bool(jnp.all(jnp.isfinite(out)))

    # Correctness vs the f32 reference (kernel uses bf16 MXU operands).
    ref = np.asarray(_reference_forward(x, params))
    err = np.max(np.abs(np.asarray(out) - ref)) / (np.max(np.abs(ref)) + 1e-6)
    assert err < 0.1, f"mismatch vs reference: normalized max err {err}"

    print("KERNEL_OK")
</pallas_src>

<mosaic_0001>
module attributes {stable_mosaic.version = 11 : i64} {
  func.func @_net_kernel(%arg0: i32, %arg1: memref<1x96x140xf32, #tpu.memory_space<vmem>>, %arg2: memref<1x96x140xf32, #tpu.memory_space<vmem>>, %arg3: memref<140x256xbf16, #tpu.memory_space<vmem>>, %arg4: memref<1x128xf32, #tpu.memory_space<vmem>>, %arg5: memref<640x256xbf16, #tpu.memory_space<vmem>>, %arg6: memref<1x128xf32, #tpu.memory_space<vmem>>, %arg7: memref<512x64xbf16, #tpu.memory_space<vmem>>, %arg8: memref<1x64xf32, #tpu.memory_space<vmem>>, %arg9: memref<64x128xbf16, #tpu.memory_space<vmem>>, %arg10: memref<1x128xf32, #tpu.memory_space<vmem>>, %arg11: memref<8x128xf32, #tpu.memory_space<vmem>>) attributes {dimension_semantics = [#tpu.dimension_semantics<parallel>], iteration_bounds = array<i64: 1>, scalar_prefetch = 0 : i64, scratch_operands = 0 : i64, tpu.core_type = #tpu.core_type<tc>, window_params = [{transform_indices = @transform_0, window_bounds = array<i64: 1, 96, 140>}, {transform_indices = @transform_1, window_bounds = array<i64: 1, 96, 140>}, {pipeline_mode = #tpu.pipeline_mode<synchronous>, transform_indices = @transform_2, window_bounds = array<i64: 140, 256>}, {pipeline_mode = #tpu.pipeline_mode<synchronous>, transform_indices = @transform_3, window_bounds = array<i64: 1, 128>}, {pipeline_mode = #tpu.pipeline_mode<synchronous>, transform_indices = @transform_4, window_bounds = array<i64: 640, 256>}, {pipeline_mode = #tpu.pipeline_mode<synchronous>, transform_indices = @transform_5, window_bounds = array<i64: 1, 128>}, {pipeline_mode = #tpu.pipeline_mode<synchronous>, transform_indices = @transform_6, window_bounds = array<i64: 512, 64>}, {pipeline_mode = #tpu.pipeline_mode<synchronous>, transform_indices = @transform_7, window_bounds = array<i64: 1, 64>}, {pipeline_mode = #tpu.pipeline_mode<synchronous>, transform_indices = @transform_8, window_bounds = array<i64: 64, 128>}, {pipeline_mode = #tpu.pipeline_mode<synchronous>, transform_indices = @transform_9, window_bounds = array<i64: 1, 128>}, {transform_indices = @transform_10, window_bounds = array<i64: 8, 128>}]} {
    %c0 = arith.constant 0 : index
    %c0_0 = arith.constant 0 : index
    %c0_1 = arith.constant 0 : index
    %0 = vector.load %arg1[%c0, %c0_0, %c0_1] : memref<1x96x140xf32, #tpu.memory_space<vmem>>, vector<1x96x140xf32>
    %1 = vector.shape_cast %0 : vector<1x96x140xf32> to vector<96x140xf32>
    %2 = arith.truncf %1 : vector<96x140xf32> to vector<96x140xbf16>
    %c0_2 = arith.constant 0 : index
    %c0_3 = arith.constant 0 : index
    %3 = vector.load %arg3[%c0_2, %c0_3] : memref<140x256xbf16, #tpu.memory_space<vmem>>, vector<140x256xbf16>
    %cst = arith.constant dense<0.000000e+00> : vector<96x256xf32>
    %4 = tpu.matmul %2, %3, %cst {dimension_numbers = #tpu.dot_dimension_numbers<[1], [0], [0], [1], [0, 0, 1, 1], [], []>} : vector<96x140xbf16>, vector<140x256xbf16>, vector<96x256xf32> -> vector<96x256xf32>
    %c0_4 = arith.constant 0 : index
    %c0_5 = arith.constant 0 : index
    %c0_6 = arith.constant 0 : index
    %5 = vector.load %arg2[%c0_4, %c0_5, %c0_6] : memref<1x96x140xf32, #tpu.memory_space<vmem>>, vector<1x96x140xf32>
    %6 = vector.shape_cast %5 : vector<1x96x140xf32> to vector<96x140xf32>
    %7 = arith.truncf %6 : vector<96x140xf32> to vector<96x140xbf16>
    %c0_7 = arith.constant 0 : index
    %c0_8 = arith.constant 0 : index
    %8 = vector.load %arg3[%c0_7, %c0_8] : memref<140x256xbf16, #tpu.memory_space<vmem>>, vector<140x256xbf16>
    %cst_9 = arith.constant dense<0.000000e+00> : vector<96x256xf32>
    %9 = tpu.matmul %7, %8, %cst_9 {dimension_numbers = #tpu.dot_dimension_numbers<[1], [0], [0], [1], [0, 0, 1, 1], [], []>} : vector<96x140xbf16>, vector<140x256xbf16>, vector<96x256xf32> -> vector<96x256xf32>
    %10 = arith.maximumf %4, %9 : vector<96x256xf32>
    %11 = vector.extract_strided_slice %10 {offsets = [0, 0], sizes = [96, 128], strides = [1, 1]} : vector<96x256xf32> to vector<96x128xf32>
    %12 = vector.extract_strided_slice %10 {offsets = [0, 128], sizes = [96, 128], strides = [1, 1]} : vector<96x256xf32> to vector<96x128xf32>
    %13 = arith.maximumf %11, %12 : vector<96x128xf32>
    %c0_10 = arith.constant 0 : index
    %c0_11 = arith.constant 0 : index
    %14 = vector.load %arg4[%c0_10, %c0_11] : memref<1x128xf32, #tpu.memory_space<vmem>>, vector<1x128xf32>
    %15 = vector.broadcast %14 : vector<1x128xf32> to vector<96x128xf32>
    %16 = arith.addf %13, %15 : vector<96x128xf32>
    %cst_12 = arith.constant 0.000000e+00 : f32
    %17 = vector.broadcast %cst_12 : f32 to vector<96x128xf32>
    %18 = arith.maximumf %16, %17 : vector<96x128xf32>
    %19 = vector.extract_strided_slice %18 {offsets = [0, 0], sizes = [64, 128], strides = [1, 1]} : vector<96x128xf32> to vector<64x128xf32>
    %20 = arith.truncf %19 : vector<64x128xf32> to vector<64x128xbf16>
    %21 = vector.extract_strided_slice %18 {offsets = [8, 0], sizes = [64, 128], strides = [1, 1]} : vector<96x128xf32> to vector<64x128xf32>
    %22 = arith.truncf %21 : vector<64x128xf32> to vector<64x128xbf16>
    %23 = vector.extract_strided_slice %18 {offsets = [16, 0], sizes = [64, 128], strides = [1, 1]} : vector<96x128xf32> to vector<64x128xf32>
    %24 = arith.truncf %23 : vector<64x128xf32> to vector<64x128xbf16>
    %25 = vector.extract_strided_slice %18 {offsets = [24, 0], sizes = [64, 128], strides = [1, 1]} : vector<96x128xf32> to vector<64x128xf32>
    %26 = arith.truncf %25 : vector<64x128xf32> to vector<64x128xbf16>
    %27 = vector.extract_strided_slice %18 {offsets = [32, 0], sizes = [64, 128], strides = [1, 1]} : vector<96x128xf32> to vector<64x128xf32>
    %28 = arith.truncf %27 : vector<64x128xf32> to vector<64x128xbf16>
    %29 = tpu.concatenate %20, %22, %24, %26, %28 in 1 : vector<64x128xbf16>, vector<64x128xbf16>, vector<64x128xbf16>, vector<64x128xbf16>, vector<64x128xbf16> -> vector<64x640xbf16>
    %c0_13 = arith.constant 0 : index
    %c0_14 = arith.constant 0 : index
    %30 = vector.load %arg5[%c0_13, %c0_14] : memref<640x256xbf16, #tpu.memory_space<vmem>>, vector<640x256xbf16>
    %cst_15 = arith.constant dense<0.000000e+00> : vector<64x256xf32>
    %31 = tpu.matmul %29, %30, %cst_15 {dimension_numbers = #tpu.dot_dimension_numbers<[1], [0], [0], [1], [0, 0, 1, 1], [], []>} : vector<64x640xbf16>, vector<640x256xbf16>, vector<64x256xf32> -> vector<64x256xf32>
    %32 = vector.extract_strided_slice %31 {offsets = [0, 0], sizes = [64, 128], strides = [1, 1]} : vector<64x256xf32> to vector<64x128xf32>
    %33 = vector.extract_strided_slice %31 {offsets = [0, 128], sizes = [64, 128], strides = [1, 1]} : vector<64x256xf32> to vector<64x128xf32>
    %34 = arith.maximumf %32, %33 : vector<64x128xf32>
    %35 = vector.extract_strided_slice %34 {offsets = [0, 0], sizes = [8, 128], strides = [1, 1]} : vector<64x128xf32> to vector<8x128xf32>
    %36 = vector.extract_strided_slice %34 {offsets = [8, 0], sizes = [8, 128], strides = [1, 1]} : vector<64x128xf32> to vector<8x128xf32>
    %37 = arith.maximumf %35, %36 : vector<8x128xf32>
    %c0_16 = arith.constant 0 : index
    %c0_17 = arith.constant 0 : index
    %38 = vector.load %arg6[%c0_16, %c0_17] : memref<1x128xf32, #tpu.memory_space<vmem>>, vector<1x128xf32>
    %39 = vector.broadcast %38 : vector<1x128xf32> to vector<8x128xf32>
    %40 = arith.addf %37, %39 : vector<8x128xf32>
    %cst_18 = arith.constant 0.000000e+00 : f32
    %41 = vector.broadcast %cst_18 : f32 to vector<8x128xf32>
    %42 = arith.maximumf %40, %41 : vector<8x128xf32>
    %43 = arith.truncf %42 : vector<8x128xf32> to vector<8x128xbf16>
    %44 = vector.extract_strided_slice %34 {offsets = [16, 0], sizes = [8, 128], strides = [1, 1]} : vector<64x128xf32> to vector<8x128xf32>
    %45 = vector.extract_strided_slice %34 {offsets = [24, 0], sizes = [8, 128], strides = [1, 1]} : vector<64x128xf32> to vector<8x128xf32>
    %46 = arith.maximumf %44, %45 : vector<8x128xf32>
    %c0_19 = arith.constant 0 : index
    %c0_20 = arith.constant 0 : index
    %47 = vector.load %arg6[%c0_19, %c0_20] : memref<1x128xf32, #tpu.memory_space<vmem>>, vector<1x128xf32>
    %48 = vector.broadcast %47 : vector<1x128xf32> to vector<8x128xf32>
    %49 = arith.addf %46, %48 : vector<8x128xf32>
    %cst_21 = arith.constant 0.000000e+00 : f32
    %50 = vector.broadcast %cst_21 : f32 to vector<8x128xf32>
    %51 = arith.maximumf %49, %50 : vector<8x128xf32>
    %52 = arith.truncf %51 : vector<8x128xf32> to vector<8x128xbf16>
    %53 = vector.extract_strided_slice %34 {offsets = [32, 0], sizes = [8, 128], strides = [1, 1]} : vector<64x128xf32> to vector<8x128xf32>
    %54 = vector.extract_strided_slice %34 {offsets = [40, 0], sizes = [8, 128], strides = [1, 1]} : vector<64x128xf32> to vector<8x128xf32>
    %55 = arith.maximumf %53, %54 : vector<8x128xf32>
    %c0_22 = arith.constant 0 : index
    %c0_23 = arith.constant 0 : index
    %56 = vector.load %arg6[%c0_22, %c0_23] : memref<1x128xf32, #tpu.memory_space<vmem>>, vector<1x128xf32>
    %57 = vector.broadcast %56 : vector<1x128xf32> to vector<8x128xf32>
    %58 = arith.addf %55, %57 : vector<8x128xf32>
    %cst_24 = arith.constant 0.000000e+00 : f32
    %59 = vector.broadcast %cst_24 : f32 to vector<8x128xf32>
    %60 = arith.maximumf %58, %59 : vector<8x128xf32>
    %61 = arith.truncf %60 : vector<8x128xf32> to vector<8x128xbf16>
    %62 = vector.extract_strided_slice %34 {offsets = [48, 0], sizes = [8, 128], strides = [1, 1]} : vector<64x128xf32> to vector<8x128xf32>
    %63 = vector.extract_strided_slice %34 {offsets = [56, 0], sizes = [8, 128], strides = [1, 1]} : vector<64x128xf32> to vector<8x128xf32>
    %64 = arith.maximumf %62, %63 : vector<8x128xf32>
    %c0_25 = arith.constant 0 : index
    %c0_26 = arith.constant 0 : index
    %65 = vector.load %arg6[%c0_25, %c0_26] : memref<1x128xf32, #tpu.memory_space<vmem>>, vector<1x128xf32>
    %66 = vector.broadcast %65 : vector<1x128xf32> to vector<8x128xf32>
    %67 = arith.addf %64, %66 : vector<8x128xf32>
    %cst_27 = arith.constant 0.000000e+00 : f32
    %68 = vector.broadcast %cst_27 : f32 to vector<8x128xf32>
    %69 = arith.maximumf %67, %68 : vector<8x128xf32>
    %70 = arith.truncf %69 : vector<8x128xf32> to vector<8x128xbf16>
    %71 = tpu.concatenate %43, %52, %61, %70 in 1 : vector<8x128xbf16>, vector<8x128xbf16>, vector<8x128xbf16>, vector<8x128xbf16> -> vector<8x512xbf16>
    %c0_28 = arith.constant 0 : index
    %c0_29 = arith.constant 0 : index
    %72 = vector.load %arg7[%c0_28, %c0_29] : memref<512x64xbf16, #tpu.memory_space<vmem>>, vector<512x64xbf16>
    %cst_30 = arith.constant dense<0.000000e+00> : vector<8x64xf32>
    %73 = tpu.matmul %71, %72, %cst_30 {dimension_numbers = #tpu.dot_dimension_numbers<[1], [0], [0], [1], [0, 0, 1, 1], [], []>} : vector<8x512xbf16>, vector<512x64xbf16>, vector<8x64xf32> -> vector<8x64xf32>
    %c0_31 = arith.constant 0 : index
    %c0_32 = arith.constant 0 : index
    %74 = vector.load %arg8[%c0_31, %c0_32] : memref<1x64xf32, #tpu.memory_space<vmem>>, vector<1x64xf32>
    %75 = vector.broadcast %74 : vector<1x64xf32> to vector<8x64xf32>
    %76 = arith.addf %73, %75 : vector<8x64xf32>
    %cst_33 = arith.constant 0.000000e+00 : f32
    %77 = vector.broadcast %cst_33 : f32 to vector<8x64xf32>
    %78 = arith.maximumf %76, %77 : vector<8x64xf32>
    %79 = arith.truncf %78 : vector<8x64xf32> to vector<8x64xbf16>
    %c0_34 = arith.constant 0 : index
    %c0_35 = arith.constant 0 : index
    %80 = vector.load %arg9[%c0_34, %c0_35] : memref<64x128xbf16, #tpu.memory_space<vmem>>, vector<64x128xbf16>
    %cst_36 = arith.constant dense<0.000000e+00> : vector<8x128xf32>
    %81 = tpu.matmul %79, %80, %cst_36 {dimension_numbers = #tpu.dot_dimension_numbers<[1], [0], [0], [1], [0, 0, 1, 1], [], []>} : vector<8x64xbf16>, vector<64x128xbf16>, vector<8x128xf32> -> vector<8x128xf32>
    %c0_37 = arith.constant 0 : index
    %c0_38 = arith.constant 0 : index
    %82 = vector.load %arg10[%c0_37, %c0_38] : memref<1x128xf32, #tpu.memory_space<vmem>>, vector<1x128xf32>
    %83 = vector.broadcast %82 : vector<1x128xf32> to vector<8x128xf32>
    %84 = arith.addf %81, %83 : vector<8x128xf32>
    %c0_39 = arith.constant 0 : index
    %c0_40 = arith.constant 0 : index
    %85 = vector.load %arg11[%c0_39, %c0_40] : memref<8x128xf32, #tpu.memory_space<vmem>>, vector<8x128xf32>
    tpu.vector_store %arg11[%c0_39, %c0_40], %84 {strides = array<i32>} : memref<8x128xf32, #tpu.memory_space<vmem>>, vector<8x128xf32>,
    return
  }
  func.func @transform_0(%arg0: i32) -> (i32, i32, i32) {
    %c0_i32 = arith.constant 0 : i32
    %c0_i32_0 = arith.constant 0 : i32
    %c0_i32_1 = arith.constant 0 : i32
    return %arg0, %c0_i32, %c0_i32_0 : i32, i32, i32
  }
  func.func @transform_1(%arg0: i32) -> (i32, i32, i32) {
    %c0_i32 = arith.constant 0 : i32
    %c0_i32_0 = arith.constant 0 : i32
    %c0_i32_1 = arith.constant 0 : i32
    return %arg0, %c0_i32, %c0_i32_0 : i32, i32, i32
  }
  func.func @transform_2(%arg0: i32) -> (i32, i32) {
    %c0_i32 = arith.constant 0 : i32
    %c0_i32_0 = arith.constant 0 : i32
    %c0_i32_1 = arith.constant 0 : i32
    return %c0_i32, %c0_i32_0 : i32, i32
  }
  func.func @transform_3(%arg0: i32) -> (i32, i32) {
    %c0_i32 = arith.constant 0 : i32
    %c0_i32_0 = arith.constant 0 : i32
    %c0_i32_1 = arith.constant 0 : i32
    return %c0_i32, %c0_i32_0 : i32, i32
  }
  func.func @transform_4(%arg0: i32) -> (i32, i32) {
    %c0_i32 = arith.constant 0 : i32
    %c0_i32_0 = arith.constant 0 : i32
    %c0_i32_1 = arith.constant 0 : i32
    return %c0_i32, %c0_i32_0 : i32, i32
  }
  func.func @transform_5(%arg0: i32) -> (i32, i32) {
    %c0_i32 = arith.constant 0 : i32
    %c0_i32_0 = arith.constant 0 : i32
    %c0_i32_1 = arith.constant 0 : i32
    return %c0_i32, %c0_i32_0 : i32, i32
  }
  func.func @transform_6(%arg0: i32) -> (i32, i32) {
    %c0_i32 = arith.constant 0 : i32
    %c0_i32_0 = arith.constant 0 : i32
    %c0_i32_1 = arith.constant 0 : i32
    return %c0_i32, %c0_i32_0 : i32, i32
  }
  func.func @transform_7(%arg0: i32) -> (i32, i32) {
    %c0_i32 = arith.constant 0 : i32
    %c0_i32_0 = arith.constant 0 : i32
    %c0_i32_1 = arith.constant 0 : i32
    return %c0_i32, %c0_i32_0 : i32, i32
  }
  func.func @transform_8(%arg0: i32) -> (i32, i32) {
    %c0_i32 = arith.constant 0 : i32
    %c0_i32_0 = arith.constant 0 : i32
    %c0_i32_1 = arith.constant 0 : i32
    return %c0_i32, %c0_i32_0 : i32, i32
  }
  func.func @transform_9(%arg0: i32) -> (i32, i32) {
    %c0_i32 = arith.constant 0 : i32
    %c0_i32_0 = arith.constant 0 : i32
    %c0_i32_1 = arith.constant 0 : i32
    return %c0_i32, %c0_i32_0 : i32, i32
  }
  func.func @transform_10(%arg0: i32) -> (i32, i32) {
    %c0_i32 = arith.constant 0 : i32
    %c0_i32_0 = arith.constant 0 : i32
    return %arg0, %c0_i32 : i32, i32
  }
}

</mosaic_0001>

<llo_original>
// kernel: _lambda_.1
$region0: #{_lambda_.1}
  #allocation0 [shape = 'u32[]', space=smem, size = 0x4, offset = 0x4, fixed_abs, tag = 'smem constant byte address 0x4 - core index']
  #allocation1 [shape = 'u32[144,128]{1,0:T(1,128)}', space=vmem, size = 0x12000, scoped, tag = 'internal scratch']
  %s0 = inlined_call_operand.vmem [shape: f32[1,96,140], index: 0, kind: input, shape index: {}]
  %s1 = inlined_call_operand.vmem [shape: f32[1,96,140], index: 1, kind: input, shape index: {}]
  %s2 = inlined_call_operand.vmem [shape: bf16[140,256], index: 2, kind: input, shape index: {}]
  %s3 = inlined_call_operand.vmem [shape: f32[1,128], index: 3, kind: input, shape index: {}]
  %s4 = inlined_call_operand.vmem [shape: bf16[640,256], index: 4, kind: input, shape index: {}]
  %s5 = inlined_call_operand.vmem [shape: f32[1,128], index: 5, kind: input, shape index: {}]
  %s6 = inlined_call_operand.vmem [shape: bf16[512,64], index: 6, kind: input, shape index: {}]
  %s7 = inlined_call_operand.vmem [shape: f32[1,64], index: 7, kind: input, shape index: {}]
  %s8 = inlined_call_operand.vmem [shape: bf16[64,128], index: 8, kind: input, shape index: {}]
  %s9 = inlined_call_operand.vmem [shape: f32[1,128], index: 9, kind: input, shape index: {}]
  %s10 = inlined_call_operand.vmem [shape: f32[8,128], index: 10, kind: output, shape index: {}]
  %s11 = sld [smem:[#allocation0]]
  $region50: #{_lambda_.1} parent=0
    _
  %s13 = ssub.s32 1, %s11
  %s14 = scalar_select 0, %s13, %s11
  // Predicated region
  $region2: #{_lambda_.1} parent=0 // pred_check
    _
  $region3: #{_lambda_.1} parent=0 // pred_check_branch
    %16 = sbr.rel (0) target = $region5
  $region4: #{_lambda_.1} parent=0 // pred_region
    _
  $region5: #{_lambda_.1} parent=0 // pred_fallthru
    _
  // Predicated region
  $region6: #{_lambda_.1} parent=0 // pred_check
    _
  $region7: #{_lambda_.1} parent=0 // pred_check_branch
    %18 = sbr.rel (0) target = $region9
  $region8: #{_lambda_.1} parent=0 // pred_region
    _
  $region9: #{_lambda_.1} parent=0 // pred_fallthru
    _
  // Predicated region
  $region10: #{_lambda_.1} parent=0 // pred_check
    _
  $region11: #{_lambda_.1} parent=0 // pred_check_branch
    %20 = sbr.rel (0) target = $region13
  $region12: #{_lambda_.1} parent=0 // pred_region
    _
  $region13: #{_lambda_.1} parent=0 // pred_fallthru
    _
  // Predicated region
  $region14: #{_lambda_.1} parent=0 // pred_check
    _
  $region15: #{_lambda_.1} parent=0 // pred_check_branch
    %22 = sbr.rel (0) target = $region17
  $region16: #{_lambda_.1} parent=0 // pred_region
    _
  $region17: #{_lambda_.1} parent=0 // pred_fallthru
    _
  // Predicated region
  $region18: #{_lambda_.1} parent=0 // pred_check
    _
  $region19: #{_lambda_.1} parent=0 // pred_check_branch
    %24 = sbr.rel (0) target = $region21
  $region20: #{_lambda_.1} parent=0 // pred_region
    _
  $region21: #{_lambda_.1} parent=0 // pred_fallthru
    _
  // Predicated region
  $region22: #{_lambda_.1} parent=0 // pred_check
    _
  $region23: #{_lambda_.1} parent=0 // pred_check_branch
    %26 = sbr.rel (0) target = $region25
  $region24: #{_lambda_.1} parent=0 // pred_region
    _
  $region25: #{_lambda_.1} parent=0 // pred_fallthru
    _
  // Predicated region
  $region26: #{_lambda_.1} parent=0 // pred_check
    _
  $region27: #{_lambda_.1} parent=0 // pred_check_branch
    %28 = sbr.rel (0) target = $region29
  $region28: #{_lambda_.1} parent=0 // pred_region
    _
  $region29: #{_lambda_.1} parent=0 // pred_fallthru
    _
  // Predicated region
  $region30: #{_lambda_.1} parent=0 // pred_check
    _
  $region31: #{_lambda_.1} parent=0 // pred_check_branch
    %30 = sbr.rel (0) target = $region33
  $region32: #{_lambda_.1} parent=0 // pred_region
    _
  $region33: #{_lambda_.1} parent=0 // pred_fallthru
    _
  // Predicated region
  $region34: #{_lambda_.1} parent=0 // pred_check
    _
  $region35: #{_lambda_.1} parent=0 // pred_check_branch
    %32 = sbr.rel (0) target = $region37
  $region36: #{_lambda_.1} parent=0 // pred_region
    _
  $region37: #{_lambda_.1} parent=0 // pred_fallthru
    _
  // Predicated region
  $region38: #{_lambda_.1} parent=0 // pred_check
    _
  $region39: #{_lambda_.1} parent=0 // pred_check_branch
    %34 = sbr.rel (0) target = $region41
  $region40: #{_lambda_.1} parent=0 // pred_region
    _
  $region41: #{_lambda_.1} parent=0 // pred_fallthru
    _
  %v36 = vld [vmem:[%s0] sm:$0xff]
  %v37 = vld [vmem:[%s0 + $0x8] sm:$0xff]
  %v38 = vld [vmem:[%s0 + $0x10] sm:$0xff]
  %v39 = vld [vmem:[%s0 + $0x18] sm:$0xff]
  %v40 = vld [vmem:[%s0 + $0x20] sm:$0xff]
  %v41 = vld [vmem:[%s0 + $0x28] sm:$0xff]
  %v42 = vld [vmem:[%s0 + $0x30] sm:$0xff]
  %v43 = vld [vmem:[%s0 + $0x38] sm:$0xff]
  %v44 = vld [vmem:[%s0 + $0x40] sm:$0xff]
  %v45 = vld [vmem:[%s0 + $0x48] sm:$0xff]
  %v46 = vld [vmem:[%s0 + $0x50] sm:$0xff]
  %v47 = vld [vmem:[%s0 + $0x58] sm:$0xff]
  %v48 = vld [vmem:[%s0 + $0x60] sm:$0xff]
  %v49 = vld [vmem:[%s0 + $0x68] sm:$0xff]
  %v50 = vld [vmem:[%s0 + $0x70] sm:$0xff]
  %v51 = vld [vmem:[%s0 + $0x78] sm:$0xff]
  %v52 = vld [vmem:[%s0 + $0x80] sm:$0xff]
  %v53 = vld [vmem:[%s0 + $0x88] sm:$0xff]
  %v54 = vld [vmem:[%s0 + $0x90] sm:$0xff]
  %v55 = vld [vmem:[%s0 + $0x98] sm:$0xff]
  %v56 = vld [vmem:[%s0 + $0xa0] sm:$0xff]
  %v57 = vld [vmem:[%s0 + $0xa8] sm:$0xff]
  %v58 = vld [vmem:[%s0 + $0xb0] sm:$0xff]
  %v59 = vld [vmem:[%s0 + $0xb8] sm:$0xff]
  %v60 = vpack.c.bf16 %v38, %v36
  %v61 = vpack.c.bf16 %v39, %v37
  %v62 = vpack.c.bf16 %v42, %v40
  %v63 = vpack.c.bf16 %v43, %v41
  %v64 = vpack.c.bf16 %v46, %v44
  %v65 = vpack.c.bf16 %v47, %v45
  %v66 = vpack.c.bf16 %v50, %v48
  %v67 = vpack.c.bf16 %v51, %v49
  %v68 = vpack.c.bf16 %v54, %v52
  %v69 = vpack.c.bf16 %v55, %v53
  %v70 = vpack.c.bf16 %v58, %v56
  %v71 = vpack.c.bf16 %v59, %v57
  %v72 = vld [vmem:[%s2] sm:$0xff]
  %v73 = vld [vmem:[%s2 + $0x8] sm:$0xff]
  %v74 = vld [vmem:[%s2 + $0x10] sm:$0xff]
  %v75 = vld [vmem:[%s2 + $0x18] sm:$0xff]
  %v76 = vld [vmem:[%s2 + $0x20] sm:$0xff]
  %v77 = vld [vmem:[%s2 + $0x28] sm:$0xff]
  %v78 = vld [vmem:[%s2 + $0x30] sm:$0xff]
  %v79 = vld [vmem:[%s2 + $0x38] sm:$0xff]
  %v80 = vld [vmem:[%s2 + $0x40] sm:$0xff]
  %v81 = vld [vmem:[%s2 + $0x48] sm:$0xff]
  %v82 = vld [vmem:[%s2 + $0x50] sm:$0xff]
  %v83 = vld [vmem:[%s2 + $0x58] sm:$0xff]
  %v84 = vld [vmem:[%s2 + $0x60] sm:$0xff]
  %v85 = vld [vmem:[%s2 + $0x68] sm:$0xff]
  %v86 = vld [vmem:[%s2 + $0x70] sm:$0xff]
  %v87 = vld [vmem:[%s2 + $0x78] sm:$0xff]
  %v88 = vld [vmem:[%s2 + $0x80] sm:$0xff]
  %v89 = vld [vmem:[%s2 + $0x88] sm:$0x33]
  %v108 = vunpack.c.l.b16 %v72
  %v109 = vunpack.c.h.b16 %v72
  %v110 = vunpack.c.l.b16 %v73
  %v111 = vunpack.c.h.b16 %v73
  %v112 = vunpack.c.l.b16 %v74
  %v113 = vunpack.c.h.b16 %v74
  %v114 = vunpack.c.l.b16 %v75
  %v115 = vunpack.c.h.b16 %v75
  %v116 = vunpack.c.l.b16 %v76
  %v117 = vunpack.c.h.b16 %v76
  %v118 = vunpack.c.l.b16 %v77
  %v119 = vunpack.c.h.b16 %v77
  %v120 = vunpack.c.l.b16 %v78
  %v121 = vunpack.c.h.b16 %v78
  %v122 = vunpack.c.l.b16 %v79
  %v123 = vunpack.c.h.b16 %v79
  %v124 = vunpack.c.l.b16 %v80
  %v125 = vunpack.c.h.b16 %v80
  %v126 = vunpack.c.l.b16 %v81
  %v127 = vunpack.c.h.b16 %v81
  %v128 = vunpack.c.l.b16 %v82
  %v129 = vunpack.c.h.b16 %v82
  %v130 = vunpack.c.l.b16 %v83
  %v131 = vunpack.c.h.b16 %v83
  %v132 = vunpack.c.l.b16 %v84
  %v133 = vunpack.c.h.b16 %v84
  %v134 = vunpack.c.l.b16 %v85
  %v135 = vunpack.c.h.b16 %v85
  %v136 = vunpack.c.l.b16 %v86
  %v137 = vunpack.c.h.b16 %v86
  %v138 = vunpack.c.l.b16 %v87
  %v139 = vunpack.c.h.b16 %v87
  %v140 = vunpack.c.l.b16 %v88
  %v141 = vunpack.c.h.b16 %v88
  %v142 = vunpack.c.l.b16 %v89
  %v143 = vunpack.c.h.b16 %v89
  %v144 = vpack.c.b16 %v110, %v108
  %v145 = vpack.c.b16 %v111, %v109
  %v146 = vpack.c.b16 %v114, %v112
  %v147 = vpack.c.b16 %v115, %v113
  %v148 = vpack.c.b16 %v118, %v116
  %v149 = vpack.c.b16 %v119, %v117
  %v150 = vpack.c.b16 %v122, %v120
  %v151 = vpack.c.b16 %v123, %v121
  %v152 = vpack.c.b16 %v126, %v124
  %v153 = vpack.c.b16 %v127, %v125
  %v154 = vpack.c.b16 %v130, %v128
  %v155 = vpack.c.b16 %v131, %v129
  %v156 = vpack.c.b16 %v134, %v132
  %v157 = vpack.c.b16 %v135, %v133
  %v158 = vpack.c.b16 %v138, %v136
  %v159 = vpack.c.b16 %v139, %v137
  %v160 = vpack.c.b16 %v142, %v140
  %v161 = vpack.c.b16 %v143, %v141
  %vm178 = vcmask 97280
  %v180 = vsel %vm178, %v61, 0
  %v183 = vsel %vm178, %v63, 0
  %v186 = vsel %vm178, %v65, 0
  %v189 = vsel %vm178, %v67, 0
  %v192 = vsel %vm178, %v69, 0
  %v195 = vsel %vm178, %v71, 0
  %vm197 = vcmask 1045504
  %v199 = vsel %vm197, %v160, 0
  %v202 = vsel %vm197, %v161, 0
  %204 = vmatprep.subr.bf16.mxu0 %v145
  %205 = vmatpush1.bf16.msra.mxu0 %v144
  %206 = vmatprep.subr.bf16.mxu0 %v147
  %207 = vmatpush1.bf16.msra.mxu0 %v146
  %208 = vmatprep.subr.bf16.mxu0 %v149
  %209 = vmatpush1.bf16.msra.mxu0 %v148
  %210 = vmatprep.subr.bf16.mxu0 %v151
  %211 = vmatpush1.bf16.msra.mxu0 %v150
  %212 = vmatprep.subr.bf16.mxu0 %v153
  %213 = vmatpush1.bf16.msra.mxu0 %v152
  %214 = vmatprep.subr.bf16.mxu0 %v155
  %215 = vmatpush1.bf16.msra.mxu0 %v154
  %216 = vmatprep.subr.bf16.mxu0 %v157
  %217 = vmatpush1.bf16.msra.mxu0 %v156
  %218 = vmatprep.subr.bf16.mxu0 %v159
  %219 = vmatpush1.bf16.msra.mxu0 %v158
  %220 = vmatprep.subr.bf16.mxu0 %v202
  %221 = vmatpush1.bf16.msra.mxu0 %v199
  %222 = vmatprep.subr.bf16.mxu0 0
  %223 = vmatpush1.bf16.msra.mxu0 0
  %224 = vmatprep.subr.bf16.mxu0 0
  %225 = vmatpush1.bf16.msra.mxu0 0
  %226 = vmatprep.subr.bf16.mxu0 0
  %227 = vmatpush1.bf16.msra.mxu0 0
  %228 = vmatprep.subr.bf16.mxu0 0
  %229 = vmatpush1.bf16.msra.mxu0 0
  %230 = vmatprep.subr.bf16.mxu0 0
  %231 = vmatpush1.bf16.msra.mxu0 0
  %232 = vmatprep.subr.bf16.mxu0 0
  %233 = vmatpush1.bf16.msra.mxu0 0
  %234 = vmatprep.subr.bf16.mxu0 0
  %235 = vmatpush1.bf16.msra.mxu0 0
  %236 = vmatprep.mubr.bf16.mxu0 %v180
  %237 = vmatmul.mubr.bf16.gmra.mrb[0].mxu0 %v60
  %v238 = vpop.f32.mrb[0].mxu0
  %v239 = vadd.f32 0.0, %v238
  %v240 = vpop.f32.mrb[0].mxu0
  %v241 = vadd.f32 0.0, %v240
  %v242 = vpop.f32.mrb[0].mxu0
  %v243 = vadd.f32 0.0, %v242
  %v244 = vpop.f32.mrb[0].mxu0
  %v245 = vadd.f32 0.0, %v244
  %246 = vmatprep.mubr.bf16.mxu0 %v183
  %247 = vmatmul.mubr.bf16.gmra.mrb[0].mxu0 %v62
  %v248 = vpop.f32.mrb[0].mxu0
  %v249 = vadd.f32 0.0, %v248
  %v250 = vpop.f32.mrb[0].mxu0
  %v251 = vadd.f32 0.0, %v250
  %v252 = vpop.f32.mrb[0].mxu0
  %v253 = vadd.f32 0.0, %v252
  %v254 = vpop.f32.mrb[0].mxu0
  %v255 = vadd.f32 0.0, %v254
  %256 = vmatprep.mubr.bf16.mxu0 %v186
  %257 = vmatmul.mubr.bf16.gmra.mrb[0].mxu0 %v64
  %v258 = vpop.f32.mrb[0].mxu0
  %v259 = vadd.f32 0.0, %v258
  %v260 = vpop.f32.mrb[0].mxu0
  %v261 = vadd.f32 0.0, %v260
  %v262 = vpop.f32.mrb[0].mxu0
  %v263 = vadd.f32 0.0, %v262
  %v264 = vpop.f32.mrb[0].mxu0
  %v265 = vadd.f32 0.0, %v264
  %266 = vmatprep.mubr.bf16.mxu0 %v189
  %267 = vmatmul.mubr.bf16.gmra.mrb[0].mxu0 %v66
  %v268 = vpop.f32.mrb[0].mxu0
  %v269 = vadd.f32 0.0, %v268
  %v270 = vpop.f32.mrb[0].mxu0
  %v271 = vadd.f32 0.0, %v270
  %v272 = vpop.f32.mrb[0].mxu0
  %v273 = vadd.f32 0.0, %v272
  %v274 = vpop.f32.mrb[0].mxu0
  %v275 = vadd.f32 0.0, %v274
  %276 = vmatprep.mubr.bf16.mxu0 %v192
  %277 = vmatmul.mubr.bf16.gmra.mrb[0].mxu0 %v68
  %v278 = vpop.f32.mrb[0].mxu0
  %v279 = vadd.f32 0.0, %v278
  %v280 = vpop.f32.mrb[0].mxu0
  %v281 = vadd.f32 0.0, %v280
  %v282 = vpop.f32.mrb[0].mxu0
  %v283 = vadd.f32 0.0, %v282
  %v284 = vpop.f32.mrb[0].mxu0
  %v285 = vadd.f32 0.0, %v284
  %286 = vmatprep.mubr.bf16.mxu0 %v195
  %287 = vmatmul.mubr.bf16.gmra.mrb[0].mxu0 %v70
  %v288 = vpop.f32.mrb[0].mxu0
  %v289 = vadd.f32 0.0, %v288
  %v290 = vpop.f32.mrb[0].mxu0
  %v291 = vadd.f32 0.0, %v290
  %v292 = vpop.f32.mrb[0].mxu0
  %v293 = vadd.f32 0.0, %v292
  %v294 = vpop.f32.mrb[0].mxu0
  %v295 = vadd.f32 0.0, %v294
  %296 = vdwg.mxu0
  %v297 = vld [vmem:[%s1] sm:$0xff]
  %v298 = vld [vmem:[%s1 + $0x8] sm:$0xff]
  %v299 = vld [vmem:[%s1 + $0x10] sm:$0xff]
  %v300 = vld [vmem:[%s1 + $0x18] sm:$0xff]
  %v301 = vld [vmem:[%s1 + $0x20] sm:$0xff]
  %v302 = vld [vmem:[%s1 + $0x28] sm:$0xff]
  %v303 = vld [vmem:[%s1 + $0x30] sm:$0xff]
  %v304 = vld [vmem:[%s1 + $0x38] sm:$0xff]
  %v305 = vld [vmem:[%s1 + $0x40] sm:$0xff]
  %v306 = vld [vmem:[%s1 + $0x48] sm:$0xff]
  %v307 = vld [vmem:[%s1 + $0x50] sm:$0xff]
  %v308 = vld [vmem:[%s1 + $0x58] sm:$0xff]
  %v309 = vld [vmem:[%s1 + $0x60] sm:$0xff]
  %v310 = vld [vmem:[%s1 + $0x68] sm:$0xff]
  %v311 = vld [vmem:[%s1 + $0x70] sm:$0xff]
  %v312 = vld [vmem:[%s1 + $0x78] sm:$0xff]
  %v313 = vld [vmem:[%s1 + $0x80] sm:$0xff]
  %v314 = vld [vmem:[%s1 + $0x88] sm:$0xff]
  %v315 = vld [vmem:[%s1 + $0x90] sm:$0xff]
  %v316 = vld [vmem:[%s1 + $0x98] sm:$0xff]
  %v317 = vld [vmem:[%s1 + $0xa0] sm:$0xff]
  %v318 = vld [vmem:[%s1 + $0xa8] sm:$0xff]
  %v319 = vld [vmem:[%s1 + $0xb0] sm:$0xff]
  %v320 = vld [vmem:[%s1 + $0xb8] sm:$0xff]
  %v321 = vpack.c.bf16 %v299, %v297
  %v322 = vpack.c.bf16 %v300, %v298
  %v323 = vpack.c.bf16 %v303, %v301
  %v324 = vpack.c.bf16 %v304, %v302
  %v325 = vpack.c.bf16 %v307, %v305
  %v326 = vpack.c.bf16 %v308, %v306
  %v327 = vpack.c.bf16 %v311, %v309
  %v328 = vpack.c.bf16 %v312, %v310
  %v329 = vpack.c.bf16 %v315, %v313
  %v330 = vpack.c.bf16 %v316, %v314
  %v331 = vpack.c.bf16 %v319, %v317
  %v332 = vpack.c.bf16 %v320, %v318
  %v334 = vsel %vm178, %v322, 0
  %v337 = vsel %vm178, %v324, 0
  %v340 = vsel %vm178, %v326, 0
  %v343 = vsel %vm178, %v328, 0
  %v346 = vsel %vm178, %v330, 0
  %v349 = vsel %vm178, %v332, 0
  %351 = vmatprep.subr.bf16.mxu0 %v145
  %352 = vmatpush1.bf16.msra.mxu0 %v144
  %353 = vmatprep.subr.bf16.mxu0 %v147
  %354 = vmatpush1.bf16.msra.mxu0 %v146
  %355 = vmatprep.subr.bf16.mxu0 %v149
  %356 = vmatpush1.bf16.msra.mxu0 %v148
  %357 = vmatprep.subr.bf16.mxu0 %v151
  %358 = vmatpush1.bf16.msra.mxu0 %v150
  %359 = vmatprep.subr.bf16.mxu0 %v153
  %360 = vmatpush1.bf16.msra.mxu0 %v152
  %361 = vmatprep.subr.bf16.mxu0 %v155
  %362 = vmatpush1.bf16.msra.mxu0 %v154
  %363 = vmatprep.subr.bf16.mxu0 %v157
  %364 = vmatpush1.bf16.msra.mxu0 %v156
  %365 = vmatprep.subr.bf16.mxu0 %v159
  %366 = vmatpush1.bf16.msra.mxu0 %v158
  %367 = vmatprep.subr.bf16.mxu0 %v202
  %368 = vmatpush1.bf16.msra.mxu0 %v199
  %369 = vmatprep.subr.bf16.mxu0 0
  %370 = vmatpush1.bf16.msra.mxu0 0
  %371 = vmatprep.subr.bf16.mxu0 0
  %372 = vmatpush1.bf16.msra.mxu0 0
  %373 = vmatprep.subr.bf16.mxu0 0
  %374 = vmatpush1.bf16.msra.mxu0 0
  %375 = vmatprep.subr.bf16.mxu0 0
  %376 = vmatpush1.bf16.msra.mxu0 0
  %377 = vmatprep.subr.bf16.mxu0 0
  %378 = vmatpush1.bf16.msra.mxu0 0
  %379 = vmatprep.subr.bf16.mxu0 0
  %380 = vmatpush1.bf16.msra.mxu0 0
  %381 = vmatprep.subr.bf16.mxu0 0
  %382 = vmatpush1.bf16.msra.mxu0 0
  %383 = vmatprep.mubr.bf16.mxu0 %v334
  %384 = vmatmul.mubr.bf16.gmra.mrb[0].mxu0 %v321
  %v385 = vpop.f32.mrb[0].mxu0
  %v386 = vadd.f32 0.0, %v385
  %v387 = vpop.f32.mrb[0].mxu0
  %v388 = vadd.f32 0.0, %v387
  %v389 = vpop.f32.mrb[0].mxu0
  %v390 = vadd.f32 0.0, %v389
  %v391 = vpop.f32.mrb[0].mxu0
  %v392 = vadd.f32 0.0, %v391
  %393 = vmatprep.mubr.bf16.mxu0 %v337
  %394 = vmatmul.mubr.bf16.gmra.mrb[0].mxu0 %v323
  %v395 = vpop.f32.mrb[0].mxu0
  %v396 = vadd.f32 0.0, %v395
  %v397 = vpop.f32.mrb[0].mxu0
  %v398 = vadd.f32 0.0, %v397
  %v399 = vpop.f32.mrb[0].mxu0
  %v400 = vadd.f32 0.0, %v399
  %v401 = vpop.f32.mrb[0].mxu0
  %v402 = vadd.f32 0.0, %v401
  %403 = vmatprep.mubr.bf16.mxu0 %v340
  %404 = vmatmul.mubr.bf16.gmra.mrb[0].mxu0 %v325
  %v405 = vpop.f32.mrb[0].mxu0
  %v406 = vadd.f32 0.0, %v405
  %v407 = vpop.f32.mrb[0].mxu0
  %v408 = vadd.f32 0.0, %v407
  %v409 = vpop.f32.mrb[0].mxu0
  %v410 = vadd.f32 0.0, %v409
  %v411 = vpop.f32.mrb[0].mxu0
  %v412 = vadd.f32 0.0, %v411
  %413 = vmatprep.mubr.bf16.mxu0 %v343
  %414 = vmatmul.mubr.bf16.gmra.mrb[0].mxu0 %v327
  %v415 = vpop.f32.mrb[0].mxu0
  %v416 = vadd.f32 0.0, %v415
  %v417 = vpop.f32.mrb[0].mxu0
  %v418 = vadd.f32 0.0, %v417
  %v419 = vpop.f32.mrb[0].mxu0
  %v420 = vadd.f32 0.0, %v419
  %v421 = vpop.f32.mrb[0].mxu0
  %v422 = vadd.f32 0.0, %v421
  %423 = vmatprep.mubr.bf16.mxu0 %v346
  %424 = vmatmul.mubr.bf16.gmra.mrb[0].mxu0 %v329
  %v425 = vpop.f32.mrb[0].mxu0
  %v426 = vadd.f32 0.0, %v425
  %v427 = vpop.f32.mrb[0].mxu0
  %v428 = vadd.f32 0.0, %v427
  %v429 = vpop.f32.mrb[0].mxu0
  %v430 = vadd.f32 0.0, %v429
  %v431 = vpop.f32.mrb[0].mxu0
  %v432 = vadd.f32 0.0, %v431
  %433 = vmatprep.mubr.bf16.mxu0 %v349
  %434 = vmatmul.mubr.bf16.gmra.mrb[0].mxu0 %v331
  %v435 = vpop.f32.mrb[0].mxu0
  %v436 = vadd.f32 0.0, %v435
  %v437 = vpop.f32.mrb[0].mxu0
  %v438 = vadd.f32 0.0, %v437
  %v439 = vpop.f32.mrb[0].mxu0
  %v440 = vadd.f32 0.0, %v439
  %v441 = vpop.f32.mrb[0].mxu0
  %v442 = vadd.f32 0.0, %v441
  %443 = vdwg.mxu0
  %v444 = vmax.f32 %v239, %v386
  %v445 = vmax.f32 %v241, %v388
  %v446 = vmax.f32 %v243, %v390
  %v447 = vmax.f32 %v245, %v392
  %v448 = vmax.f32 %v249, %v396
  %v449 = vmax.f32 %v251, %v398
  %v450 = vmax.f32 %v253, %v400
  %v451 = vmax.f32 %v255, %v402
  %v452 = vmax.f32 %v259, %v406
  %v453 = vmax.f32 %v261, %v408
  %v454 = vmax.f32 %v263, %v410
  %v455 = vmax.f32 %v265, %v412
  %v456 = vmax.f32 %v269, %v416
  %v457 = vmax.f32 %v271, %v418
  %v458 = vmax.f32 %v273, %v420
  %v459 = vmax.f32 %v275, %v422
  %v460 = vmax.f32 %v279, %v426
  %v461 = vmax.f32 %v281, %v428
  %v462 = vmax.f32 %v283, %v430
  %v463 = vmax.f32 %v285, %v432
  %v464 = vmax.f32 %v289, %v436
  %v465 = vmax.f32 %v291, %v438
  %v466 = vmax.f32 %v293, %v440
  %v467 = vmax.f32 %v295, %v442
  %v468 = vmax.f32 %v444, %v445
  %v469 = vmax.f32 %v446, %v447
  %v470 = vmax.f32 %v448, %v449
  %v471 = vmax.f32 %v450, %v451
  %v472 = vmax.f32 %v452, %v453
  %v473 = vmax.f32 %v454, %v455
  %v474 = vmax.f32 %v456, %v457
  %v475 = vmax.f32 %v458, %v459
  %v476 = vmax.f32 %v460, %v461
  %v477 = vmax.f32 %v462, %v463
  %v478 = vmax.f32 %v464, %v465
  %v479 = vmax.f32 %v466, %v467
  %v480 = vld [vmem:[%s3] sm:$0x1]
  %v482 = vlaneseq
  %v483 = vshrl.u32 %v482, 7
  %v484 = vsub.s32 0, %v483
  %v485 = vrot.slane %v480, %v484
  %v487 = vadd.f32 %v468, %v485
  %v488 = vadd.f32 %v469, %v485
  %v489 = vadd.f32 %v470, %v485
  %v490 = vadd.f32 %v471, %v485
  %v491 = vadd.f32 %v472, %v485
  %v492 = vadd.f32 %v473, %v485
  %v493 = vadd.f32 %v474, %v485
  %v494 = vadd.f32 %v475, %v485
  %v495 = vadd.f32 %v476, %v485
  %v496 = vadd.f32 %v477, %v485
  %v497 = vadd.f32 %v478, %v485
  %v498 = vadd.f32 %v479, %v485
  %v499 = vmax.f32 %v487, 0.0
  %v500 = vmax.f32 %v488, 0.0
  %v501 = vmax.f32 %v489, 0.0
  %v502 = vmax.f32 %v490, 0.0
  %v503 = vmax.f32 %v491, 0.0
  %v504 = vmax.f32 %v492, 0.0
  %v505 = vmax.f32 %v493, 0.0
  %v506 = vmax.f32 %v494, 0.0
  %v507 = vmax.f32 %v495, 0.0
  %v508 = vmax.f32 %v496, 0.0
  %v509 = vmax.f32 %v497, 0.0
  %v510 = vmax.f32 %v498, 0.0
  %v511 = vpack.c.bf16 %v500, %v499
  %v512 = vpack.c.bf16 %v502, %v501
  %v513 = vpack.c.bf16 %v504, %v503
  %v514 = vpack.c.bf16 %v506, %v505
  %v515 = vpack.c.bf16 %v501, %v500
  %v516 = vpack.c.bf16 %v503, %v502
  %v517 = vpack.c.bf16 %v505, %v504
  %v518 = vpack.c.bf16 %v507, %v506
  %v519 = vpack.c.bf16 %v508, %v507
  %v520 = vpack.c.bf16 %v509, %v508
  %v521 = vpack.c.bf16 %v510, %v509
  %v522 = vld [vmem:[%s4] sm:$0xff]
  %v523 = vld [vmem:[%s4 + $0x8] sm:$0xff]
  %v524 = vld [vmem:[%s4 + $0x10] sm:$0xff]
  %v525 = vld [vmem:[%s4 + $0x18] sm:$0xff]
  %v526 = vld [vmem:[%s4 + $0x20] sm:$0xff]
  %v527 = vld [vmem:[%s4 + $0x28] sm:$0xff]
  %v528 = vld [vmem:[%s4 + $0x30] sm:$0xff]
  %v529 = vld [vmem:[%s4 + $0x38] sm:$0xff]
  %v530 = vld [vmem:[%s4 + $0x40] sm:$0xff]
  %v531 = vld [vmem:[%s4 + $0x48] sm:$0xff]
  %v532 = vld [vmem:[%s4 + $0x50] sm:$0xff]
  %v533 = vld [vmem:[%s4 + $0x58] sm:$0xff]
  %v534 = vld [vmem:[%s4 + $0x60] sm:$0xff]
  %v535 = vld [vmem:[%s4 + $0x68] sm:$0xff]
  %v536 = vld [vmem:[%s4 + $0x70] sm:$0xff]
  %v537 = vld [vmem:[%s4 + $0x78] sm:$0xff]
  %v538 = vld [vmem:[%s4 + $0x80] sm:$0xff]
  %v539 = vld [vmem:[%s4 + $0x88] sm:$0xff]
  %v540 = vld [vmem:[%s4 + $0x90] sm:$0xff]
  %v541 = vld [vmem:[%s4 + $0x98] sm:$0xff]
  %v542 = vld [vmem:[%s4 + $0xa0] sm:$0xff]
  %v543 = vld [vmem:[%s4 + $0xa8] sm:$0xff]
  %v544 = vld [vmem:[%s4 + $0xb0] sm:$0xff]
  %v545 = vld [vmem:[%s4 + $0xb8] sm:$0xff]
  %v546 = vld [vmem:[%s4 + $0xc0] sm:$0xff]
  %v547 = vld [vmem:[%s4 + $0xc8] sm:$0xff]
  %v548 = vld [vmem:[%s4 + $0xd0] sm:$0xff]
  %v549 = vld [vmem:[%s4 + $0xd8] sm:$0xff]
  %v550 = vld [vmem:[%s4 + $0xe0] sm:$0xff]
  %v551 = vld [vmem:[%s4 + $0xe8] sm:$0xff]
  %v552 = vld [vmem:[%s4 + $0xf0] sm:$0xff]
  %v553 = vld [vmem:[%s4 + $0xf8] sm:$0xff]
  %v554 = vld [vmem:[%s4 + $0x100] sm:$0xff]
  %v555 = vld [vmem:[%s4 + $0x108] sm:$0xff]
  %v556 = vld [vmem:[%s4 + $0x110] sm:$0xff]
  %v557 = vld [vmem:[%s4 + $0x118] sm:$0xff]
  %v558 = vld [vmem:[%s4 + $0x120] sm:$0xff]
  %v559 = vld [vmem:[%s4 + $0x128] sm:$0xff]
  %v560 = vld [vmem:[%s4 + $0x130] sm:$0xff]
  %v561 = vld [vmem:[%s4 + $0x138] sm:$0xff]
  %v562 = vld [vmem:[%s4 + $0x140] sm:$0xff]
  %v563 = vld [vmem:[%s4 + $0x148] sm:$0xff]
  %v564 = vld [vmem:[%s4 + $0x150] sm:$0xff]
  %v565 = vld [vmem:[%s4 + $0x158] sm:$0xff]
  %v566 = vld [vmem:[%s4 + $0x160] sm:$0xff]
  %v567 = vld [vmem:[%s4 + $0x168] sm:$0xff]
  %v568 = vld [vmem:[%s4 + $0x170] sm:$0xff]
  %v569 = vld [vmem:[%s4 + $0x178] sm:$0xff]
  %v570 = vld [vmem:[%s4 + $0x180] sm:$0xff]
  %v571 = vld [vmem:[%s4 + $0x188] sm:$0xff]
  %v572 = vld [vmem:[%s4 + $0x190] sm:$0xff]
  %v573 = vld [vmem:[%s4 + $0x198] sm:$0xff]
  %v574 = vld [vmem:[%s4 + $0x1a0] sm:$0xff]
  %v575 = vld [vmem:[%s4 + $0x1a8] sm:$0xff]
  %v576 = vld [vmem:[%s4 + $0x1b0] sm:$0xff]
  %v577 = vld [vmem:[%s4 + $0x1b8] sm:$0xff]
  %v578 = vld [vmem:[%s4 + $0x1c0] sm:$0xff]
  %v579 = vld [vmem:[%s4 + $0x1c8] sm:$0xff]
  %v580 = vld [vmem:[%s4 + $0x1d0] sm:$0xff]
  %v581 = vld [vmem:[%s4 + $0x1d8] sm:$0xff]
  %v582 = vld [vmem:[%s4 + $0x1e0] sm:$0xff]
  %v583 = vld [vmem:[%s4 + $0x1e8] sm:$0xff]
  %v584 = vld [vmem:[%s4 + $0x1f0] sm:$0xff]
  %v585 = vld [vmem:[%s4 + $0x1f8] sm:$0xff]
  %v586 = vld [vmem:[%s4 + $0x200] sm:$0xff]
  %v587 = vld [vmem:[%s4 + $0x208] sm:$0xff]
  %v588 = vld [vmem:[%s4 + $0x210] sm:$0xff]
  %v589 = vld [vmem:[%s4 + $0x218] sm:$0xff]
  %v590 = vld [vmem:[%s4 + $0x220] sm:$0xff]
  %v591 = vld [vmem:[%s4 + $0x228] sm:$0xff]
  %v592 = vld [vmem:[%s4 + $0x230] sm:$0xff]
  %v593 = vld [vmem:[%s4 + $0x238] sm:$0xff]
  %v594 = vld [vmem:[%s4 + $0x240] sm:$0xff]
  %v595 = vld [vmem:[%s4 + $0x248] sm:$0xff]
  %v596 = vld [vmem:[%s4 + $0x250] sm:$0xff]
  %v597 = vld [vmem:[%s4 + $0x258] sm:$0xff]
  %v598 = vld [vmem:[%s4 + $0x260] sm:$0xff]
  %v599 = vld [vmem:[%s4 + $0x268] sm:$0xff]
  %v600 = vld [vmem:[%s4 + $0x270] sm:$0xff]
  %v601 = vld [vmem:[%s4 + $0x278] sm:$0xff]
  %v682 = vunpack.c.l.b16 %v522
  %v683 = vunpack.c.h.b16 %v522
  %v684 = vunpack.c.l.b16 %v523
  %v685 = vunpack.c.h.b16 %v523
  %v686 = vunpack.c.l.b16 %v524
  %v687 = vunpack.c.h.b16 %v524
  %v688 = vunpack.c.l.b16 %v525
  %v689 = vunpack.c.h.b16 %v525
  %v690 = vunpack.c.l.b16 %v526
  %v691 = vunpack.c.h.b16 %v526
  %v692 = vunpack.c.l.b16 %v527
  %v693 = vunpack.c.h.b16 %v527
  %v694 = vunpack.c.l.b16 %v528
  %v695 = vunpack.c.h.b16 %v528
  %v696 = vunpack.c.l.b16 %v529
  %v697 = vunpack.c.h.b16 %v529
  %v698 = vunpack.c.l.b16 %v530
  %v699 = vunpack.c.h.b16 %v530
  %v700 = vunpack.c.l.b16 %v531
  %v701 = vunpack.c.h.b16 %v531
  %v702 = vunpack.c.l.b16 %v532
  %v703 = vunpack.c.h.b16 %v532
  %v704 = vunpack.c.l.b16 %v533
  %v705 = vunpack.c.h.b16 %v533
  %v706 = vunpack.c.l.b16 %v534
  %v707 = vunpack.c.h.b16 %v534
  %v708 = vunpack.c.l.b16 %v535
  %v709 = vunpack.c.h.b16 %v535
  %v710 = vunpack.c.l.b16 %v536
  %v711 = vunpack.c.h.b16 %v536
  %v712 = vunpack.c.l.b16 %v537
  %v713 = vunpack.c.h.b16 %v537
  %v714 = vunpack.c.l.b16 %v538
  %v715 = vunpack.c.h.b16 %v538
  %v716 = vunpack.c.l.b16 %v539
  %v717 = vunpack.c.h.b16 %v539
  %v718 = vunpack.c.l.b16 %v540
  %v719 = vunpack.c.h.b16 %v540
  %v720 = vunpack.c.l.b16 %v541
  %v721 = vunpack.c.h.b16 %v541
  %v722 = vunpack.c.l.b16 %v542
  %v723 = vunpack.c.h.b16 %v542
  %v724 = vunpack.c.l.b16 %v543
  %v725 = vunpack.c.h.b16 %v543
  %v726 = vunpack.c.l.b16 %v544
  %v727 = vunpack.c.h.b16 %v544
  %v728 = vunpack.c.l.b16 %v545
  %v729 = vunpack.c.h.b16 %v545
  %v730 = vunpack.c.l.b16 %v546
  %v731 = vunpack.c.h.b16 %v546
  %v732 = vunpack.c.l.b16 %v547
  %v733 = vunpack.c.h.b16 %v547
  %v734 = vunpack.c.l.b16 %v548
  %v735 = vunpack.c.h.b16 %v548
  %v736 = vunpack.c.l.b16 %v549
  %v737 = vunpack.c.h.b16 %v549
  %v738 = vunpack.c.l.b16 %v550
  %v739 = vunpack.c.h.b16 %v550
  %v740 = vunpack.c.l.b16 %v551
  %v741 = vunpack.c.h.b16 %v551
  %v742 = vunpack.c.l.b16 %v552
  %v743 = vunpack.c.h.b16 %v552
  %v744 = vunpack.c.l.b16 %v553
  %v745 = vunpack.c.h.b16 %v553
  %v746 = vunpack.c.l.b16 %v554
  %v747 = vunpack.c.h.b16 %v554
  %v748 = vunpack.c.l.b16 %v555
  %v749 = vunpack.c.h.b16 %v555
  %v750 = vunpack.c.l.b16 %v556
  %v751 = vunpack.c.h.b16 %v556
  %v752 = vunpack.c.l.b16 %v557
  %v753 = vunpack.c.h.b16 %v557
  %v754 = vunpack.c.l.b16 %v558
  %v755 = vunpack.c.h.b16 %v558
  %v756 = vunpack.c.l.b16 %v559
  %v757 = vunpack.c.h.b16 %v559
  %v758 = vunpack.c.l.b16 %v560
  %v759 = vunpack.c.h.b16 %v560
  %v760 = vunpack.c.l.b16 %v561
  %v761 = vunpack.c.h.b16 %v561
  %v762 = vunpack.c.l.b16 %v562
  %v763 = vunpack.c.h.b16 %v562
  %v764 = vunpack.c.l.b16 %v563
  %v765 = vunpack.c.h.b16 %v563
  %v766 = vunpack.c.l.b16 %v564
  %v767 = vunpack.c.h.b16 %v564
  %v768 = vunpack.c.l.b16 %v565
  %v769 = vunpack.c.h.b16 %v565
  %v770 = vunpack.c.l.b16 %v566
  %v771 = vunpack.c.h.b16 %v566
  %v772 = vunpack.c.l.b16 %v567
  %v773 = vunpack.c.h.b16 %v567
  %v774 = vunpack.c.l.b16 %v568
  %v775 = vunpack.c.h.b16 %v568
  %v776 = vunpack.c.l.b16 %v569
  %v777 = vunpack.c.h.b16 %v569
  %v778 = vunpack.c.l.b16 %v570
  %v779 = vunpack.c.h.b16 %v570
  %v780 = vunpack.c.l.b16 %v571
  %v781 = vunpack.c.h.b16 %v571
  %v782 = vunpack.c.l.b16 %v572
  %v783 = vunpack.c.h.b16 %v572
  %v784 = vunpack.c.l.b16 %v573
  %v785 = vunpack.c.h.b16 %v573
  %v786 = vunpack.c.l.b16 %v574
  %v787 = vunpack.c.h.b16 %v574
  %v788 = vunpack.c.l.b16 %v575
  %v789 = vunpack.c.h.b16 %v575
  %v790 = vunpack.c.l.b16 %v576
  %v791 = vunpack.c.h.b16 %v576
  %v792 = vunpack.c.l.b16 %v577
  %v793 = vunpack.c.h.b16 %v577
  %v794 = vunpack.c.l.b16 %v578
  %v795 = vunpack.c.h.b16 %v578
  %v796 = vunpack.c.l.b16 %v579
  %v797 = vunpack.c.h.b16 %v579
  %v798 = vunpack.c.l.b16 %v580
  %v799 = vunpack.c.h.b16 %v580
  %v800 = vunpack.c.l.b16 %v581
  %v801 = vunpack.c.h.b16 %v581
  %v802 = vunpack.c.l.b16 %v582
  %v803 = vunpack.c.h.b16 %v582
  %v804 = vunpack.c.l.b16 %v583
  %v805 = vunpack.c.h.b16 %v583
  %v806 = vunpack.c.l.b16 %v584
  %v807 = vunpack.c.h.b16 %v584
  %v808 = vunpack.c.l.b16 %v585
  %v809 = vunpack.c.h.b16 %v585
  %v810 = vunpack.c.l.b16 %v586
  %v811 = vunpack.c.h.b16 %v586
  %v812 = vunpack.c.l.b16 %v587
  %v813 = vunpack.c.h.b16 %v587
  %v814 = vunpack.c.l.b16 %v588
  %v815 = vunpack.c.h.b16 %v588
  %v816 = vunpack.c.l.b16 %v589
  %v817 = vunpack.c.h.b16 %v589
  %v818 = vunpack.c.l.b16 %v590
  %v819 = vunpack.c.h.b16 %v590
  %v820 = vunpack.c.l.b16 %v591
  %v821 = vunpack.c.h.b16 %v591
  %v822 = vunpack.c.l.b16 %v592
  %v823 = vunpack.c.h.b16 %v592
  %v824 = vunpack.c.l.b16 %v593
  %v825 = vunpack.c.h.b16 %v593
  %v826 = vunpack.c.l.b16 %v594
  %v827 = vunpack.c.h.b16 %v594
  %v828 = vunpack.c.l.b16 %v595
  %v829 = vunpack.c.h.b16 %v595
  %v830 = vunpack.c.l.b16 %v596
  %v831 = vunpack.c.h.b16 %v596
  %v832 = vunpack.c.l.b16 %v597
  %v833 = vunpack.c.h.b16 %v597
  %v834 = vunpack.c.l.b16 %v598
  %v835 = vunpack.c.h.b16 %v598
  %v836 = vunpack.c.l.b16 %v599
  %v837 = vunpack.c.h.b16 %v599
  %v838 = vunpack.c.l.b16 %v600
  %v839 = vunpack.c.h.b16 %v600
  %v840 = vunpack.c.l.b16 %v601
  %v841 = vunpack.c.h.b16 %v601
  %v842 = vpack.c.b16 %v684, %v682
  %v843 = vpack.c.b16 %v685, %v683
  %v844 = vpack.c.b16 %v688, %v686
  %v845 = vpack.c.b16 %v689, %v687
  %v846 = vpack.c.b16 %v692, %v690
  %v847 = vpack.c.b16 %v693, %v691
  %v848 = vpack.c.b16 %v696, %v694
  %v849 = vpack.c.b16 %v697, %v695
  %v850 = vpack.c.b16 %v700, %v698
  %v851 = vpack.c.b16 %v701, %v699
  %v852 = vpack.c.b16 %v704, %v702
  %v853 = vpack.c.b16 %v705, %v703
  %v854 = vpack.c.b16 %v708, %v706
  %v855 = vpack.c.b16 %v709, %v707
  %v856 = vpack.c.b16 %v712, %v710
  %v857 = vpack.c.b16 %v713, %v711
  %v858 = vpack.c.b16 %v716, %v714
  %v859 = vpack.c.b16 %v717, %v715
  %v860 = vpack.c.b16 %v720, %v718
  %v861 = vpack.c.b16 %v721, %v719
  %v862 = vpack.c.b16 %v724, %v722
  %v863 = vpack.c.b16 %v725, %v723
  %v864 = vpack.c.b16 %v728, %v726
  %v865 = vpack.c.b16 %v729, %v727
  %v866 = vpack.c.b16 %v732, %v730
  %v867 = vpack.c.b16 %v733, %v731
  %v868 = vpack.c.b16 %v736, %v734
  %v869 = vpack.c.b16 %v737, %v735
  %v870 = vpack.c.b16 %v740, %v738
  %v871 = vpack.c.b16 %v741, %v739
  %v872 = vpack.c.b16 %v744, %v742
  %v873 = vpack.c.b16 %v745, %v743
  %v874 = vpack.c.b16 %v748, %v746
  %v875 = vpack.c.b16 %v749, %v747
  %v876 = vpack.c.b16 %v752, %v750
  %v877 = vpack.c.b16 %v753, %v751
  %v878 = vpack.c.b16 %v756, %v754
  %v879 = vpack.c.b16 %v757, %v755
  %v880 = vpack.c.b16 %v760, %v758
  %v881 = vpack.c.b16 %v761, %v759
  %v882 = vpack.c.b16 %v764, %v762
  %v883 = vpack.c.b16 %v765, %v763
  %v884 = vpack.c.b16 %v768, %v766
  %v885 = vpack.c.b16 %v769, %v767
  %v886 = vpack.c.b16 %v772, %v770
  %v887 = vpack.c.b16 %v773, %v771
  %v888 = vpack.c.b16 %v776, %v774
  %v889 = vpack.c.b16 %v777, %v775
  %v890 = vpack.c.b16 %v780, %v778
  %v891 = vpack.c.b16 %v781, %v779
  %v892 = vpack.c.b16 %v784, %v782
  %v893 = vpack.c.b16 %v785, %v783
  %v894 = vpack.c.b16 %v788, %v786
  %v895 = vpack.c.b16 %v789, %v787
  %v896 = vpack.c.b16 %v792, %v790
  %v897 = vpack.c.b16 %v793, %v791
  %v898 = vpack.c.b16 %v796, %v794
  %v899 = vpack.c.b16 %v797, %v795
  %v900 = vpack.c.b16 %v800, %v798
  %v901 = vpack.c.b16 %v801, %v799
  %v902 = vpack.c.b16 %v804, %v802
  %v903 = vpack.c.b16 %v805, %v803
  %v904 = vpack.c.b16 %v808, %v806
  %v905 = vpack.c.b16 %v809, %v807
  %v906 = vpack.c.b16 %v812, %v810
  %v907 = vpack.c.b16 %v813, %v811
  %v908 = vpack.c.b16 %v816, %v814
  %v909 = vpack.c.b16 %v817, %v815
  %v910 = vpack.c.b16 %v820, %v818
  %v911 = vpack.c.b16 %v821, %v819
  %v912 = vpack.c.b16 %v824, %v822
  %v913 = vpack.c.b16 %v825, %v823
  %v914 = vpack.c.b16 %v828, %v826
  %v915 = vpack.c.b16 %v829, %v827
  %v916 = vpack.c.b16 %v832, %v830
  %v917 = vpack.c.b16 %v833, %v831
  %v918 = vpack.c.b16 %v836, %v834
  %v919 = vpack.c.b16 %v837, %v835
  %v920 = vpack.c.b16 %v840, %v838
  %v921 = vpack.c.b16 %v841, %v839
  %1002 = vmatprep.subr.bf16.mxu0 %v843
  %1003 = vmatpush1.bf16.msra.mxu0 %v842
  %1004 = vmatprep.subr.bf16.mxu0 %v845
  %1005 = vmatpush1.bf16.msra.mxu0 %v844
  %1006 = vmatprep.subr.bf16.mxu0 %v847
  %1007 = vmatpush1.bf16.msra.mxu0 %v846
  %1008 = vmatprep.subr.bf16.mxu0 %v849
  %1009 = vmatpush1.bf16.msra.mxu0 %v848
  %1010 = vmatprep.subr.bf16.mxu0 %v851
  %1011 = vmatpush1.bf16.msra.mxu0 %v850
  %1012 = vmatprep.subr.bf16.mxu0 %v853
  %1013 = vmatpush1.bf16.msra.mxu0 %v852
  %1014 = vmatprep.subr.bf16.mxu0 %v855
  %1015 = vmatpush1.bf16.msra.mxu0 %v854
  %1016 = vmatprep.subr.bf16.mxu0 %v857
  %1017 = vmatpush1.bf16.msra.mxu0 %v856
  %1018 = vmatprep.subr.bf16.mxu0 %v859
  %1019 = vmatpush1.bf16.msra.mxu0 %v858
  %1020 = vmatprep.subr.bf16.mxu0 %v861
  %1021 = vmatpush1.bf16.msra.mxu0 %v860
  %1022 = vmatprep.subr.bf16.mxu0 %v863
  %1023 = vmatpush1.bf16.msra.mxu0 %v862
  %1024 = vmatprep.subr.bf16.mxu0 %v865
  %1025 = vmatpush1.bf16.msra.mxu0 %v864
  %1026 = vmatprep.subr.bf16.mxu0 %v867
  %1027 = vmatpush1.bf16.msra.mxu0 %v866
  %1028 = vmatprep.subr.bf16.mxu0 %v869
  %1029 = vmatpush1.bf16.msra.mxu0 %v868
  %1030 = vmatprep.subr.bf16.mxu0 %v871
  %1031 = vmatpush1.bf16.msra.mxu0 %v870
  %1032 = vmatprep.subr.bf16.mxu0 %v873
  %1033 = vmatpush1.bf16.msra.mxu0 %v872
  %1034 = vmatprep.mubr.bf16.mxu0 %v515
  %1035 = vmatmul.mubr.bf16.gmra.mrb[0].mxu0 %v511
  %v1036 = vpop.f32.mrb[0].mxu0
  %v1037 = vadd.f32 0.0, %v1036
  %v1038 = vpop.f32.mrb[0].mxu0
  %v1039 = vadd.f32 0.0, %v1038
  %v1040 = vpop.f32.mrb[0].mxu0
  %v1041 = vadd.f32 0.0, %v1040
  %v1042 = vpop.f32.mrb[0].mxu0
  %v1043 = vadd.f32 0.0, %v1042
  %1044 = vmatprep.mubr.bf16.mxu0 %v516
  %1045 = vmatmul.mubr.bf16.gmra.mrb[0].mxu0 %v512
  %v1046 = vpop.f32.mrb[0].mxu0
  %v1047 = vadd.f32 0.0, %v1046
  %v1048 = vpop.f32.mrb[0].mxu0
  %v1049 = vadd.f32 0.0, %v1048
  %v1050 = vpop.f32.mrb[0].mxu0
  %v1051 = vadd.f32 0.0, %v1050
  %v1052 = vpop.f32.mrb[0].mxu0
  %v1053 = vadd.f32 0.0, %v1052
  %1054 = vmatprep.mubr.bf16.mxu0 %v517
  %1055 = vmatmul.mubr.bf16.gmra.mrb[0].mxu0 %v513
  %v1056 = vpop.f32.mrb[0].mxu0
  %v1057 = vadd.f32 0.0, %v1056
  %v1058 = vpop.f32.mrb[0].mxu0
  %v1059 = vadd.f32 0.0, %v1058
  %v1060 = vpop.f32.mrb[0].mxu0
  %v1061 = vadd.f32 0.0, %v1060
  %v1062 = vpop.f32.mrb[0].mxu0
  %v1063 = vadd.f32 0.0, %v1062
  %1064 = vmatprep.mubr.bf16.mxu0 %v518
  %1065 = vmatmul.mubr.bf16.gmra.mrb[0].mxu0 %v514
  %v1066 = vpop.f32.mrb[0].mxu0
  %v1067 = vadd.f32 0.0, %v1066
  %v1068 = vpop.f32.mrb[0].mxu0
  %v1069 = vadd.f32 0.0, %v1068
  %v1070 = vpop.f32.mrb[0].mxu0
  %v1071 = vadd.f32 0.0, %v1070
  %v1072 = vpop.f32.mrb[0].mxu0
  %v1073 = vadd.f32 0.0, %v1072
  %1074 = vdwg.mxu0
  %1075 = vmatprep.subr.bf16.mxu0 %v875
  %1076 = vmatpush1.bf16.msra.mxu0 %v874
  %1077 = vmatprep.subr.bf16.mxu0 %v877
  %1078 = vmatpush1.bf16.msra.mxu0 %v876
  %1079 = vmatprep.subr.bf16.mxu0 %v879
  %1080 = vmatpush1.bf16.msra.mxu0 %v878
  %1081 = vmatprep.subr.bf16.mxu0 %v881
  %1082 = vmatpush1.bf16.msra.mxu0 %v880
  %1083 = vmatprep.subr.bf16.mxu0 %v883
  %1084 = vmatpush1.bf16.msra.mxu0 %v882
  %1085 = vmatprep.subr.bf16.mxu0 %v885
  %1086 = vmatpush1.bf16.msra.mxu0 %v884
  %1087 = vmatprep.subr.bf16.mxu0 %v887
  %1088 = vmatpush1.bf16.msra.mxu0 %v886
  %1089 = vmatprep.subr.bf16.mxu0 %v889
  %1090 = vmatpush1.bf16.msra.mxu0 %v888
  %1091 = vmatprep.subr.bf16.mxu0 %v891
  %1092 = vmatpush1.bf16.msra.mxu0 %v890
  %1093 = vmatprep.subr.bf16.mxu0 %v893
  %1094 = vmatpush1.bf16.msra.mxu0 %v892
  %1095 = vmatprep.subr.bf16.mxu0 %v895
  %1096 = vmatpush1.bf16.msra.mxu0 %v894
  %1097 = vmatprep.subr.bf16.mxu0 %v897
  %1098 = vmatpush1.bf16.msra.mxu0 %v896
  %1099 = vmatprep.subr.bf16.mxu0 %v899
  %1100 = vmatpush1.bf16.msra.mxu0 %v898
  %1101 = vmatprep.subr.bf16.mxu0 %v901
  %1102 = vmatpush1.bf16.msra.mxu0 %v900
  %1103 = vmatprep.subr.bf16.mxu0 %v903
  %1104 = vmatpush1.bf16.msra.mxu0 %v902
  %1105 = vmatprep.subr.bf16.mxu0 %v905
  %1106 = vmatpush1.bf16.msra.mxu0 %v904
  %1107 = vmatprep.mubr.bf16.mxu0 %v516
  %1108 = vmatmul.mubr.bf16.gmra.mrb[0].mxu0 %v512
  %v1109 = vpop.f32.mrb[0].mxu0
  %v1110 = vadd.f32 %v1037, %v1109
  %v1111 = vpop.f32.mrb[0].mxu0
  %v1112 = vadd.f32 %v1039, %v1111
  %v1113 = vpop.f32.mrb[0].mxu0
  %v1114 = vadd.f32 %v1041, %v1113
  %v1115 = vpop.f32.mrb[0].mxu0
  %v1116 = vadd.f32 %v1043, %v1115
  %1117 = vmatprep.mubr.bf16.mxu0 %v517
  %1118 = vmatmul.mubr.bf16.gmra.mrb[0].mxu0 %v513
  %v1119 = vpop.f32.mrb[0].mxu0
  %v1120 = vadd.f32 %v1047, %v1119
  %v1121 = vpop.f32.mrb[0].mxu0
  %v1122 = vadd.f32 %v1049, %v1121
  %v1123 = vpop.f32.mrb[0].mxu0
  %v1124 = vadd.f32 %v1051, %v1123
  %v1125 = vpop.f32.mrb[0].mxu0
  %v1126 = vadd.f32 %v1053, %v1125
  %1127 = vmatprep.mubr.bf16.mxu0 %v518
  %1128 = vmatmul.mubr.bf16.gmra.mrb[0].mxu0 %v514
  %v1129 = vpop.f32.mrb[0].mxu0
  %v1130 = vadd.f32 %v1057, %v1129
  %v1131 = vpop.f32.mrb[0].mxu0
  %v1132 = vadd.f32 %v1059, %v1131
  %v1133 = vpop.f32.mrb[0].mxu0
  %v1134 = vadd.f32 %v1061, %v1133
  %v1135 = vpop.f32.mrb[0].mxu0
  %v1136 = vadd.f32 %v1063, %v1135
  %1137 = vmatprep.mubr.bf16.mxu0 %v520
  %1138 = vmatmul.mubr.bf16.gmra.mrb[0].mxu0 %v519
  %v1139 = vpop.f32.mrb[0].mxu0
  %v1140 = vadd.f32 %v1067, %v1139
  %v1141 = vpop.f32.mrb[0].mxu0
  %v1142 = vadd.f32 %v1069, %v1141
  %v1143 = vpop.f32.mrb[0].mxu0
  %v1144 = vadd.f32 %v1071, %v1143
  %v1145 = vpop.f32.mrb[0].mxu0
  %v1146 = vadd.f32 %v1073, %v1145
  %1147 = vdwg.mxu0
  %1148 = vmatprep.subr.bf16.mxu0 %v907
  %1149 = vmatpush1.bf16.msra.mxu0 %v906
  %1150 = vmatprep.subr.bf16.mxu0 %v909
  %1151 = vmatpush1.bf16.msra.mxu0 %v908
  %1152 = vmatprep.subr.bf16.mxu0 %v911
  %1153 = vmatpush1.bf16.msra.mxu0 %v910
  %1154 = vmatprep.subr.bf16.mxu0 %v913
  %1155 = vmatpush1.bf16.msra.mxu0 %v912
  %1156 = vmatprep.subr.bf16.mxu0 %v915
  %1157 = vmatpush1.bf16.msra.mxu0 %v914
  %1158 = vmatprep.subr.bf16.mxu0 %v917
  %1159 = vmatpush1.bf16.msra.mxu0 %v916
  %1160 = vmatprep.subr.bf16.mxu0 %v919
  %1161 = vmatpush1.bf16.msra.mxu0 %v918
  %1162 = vmatprep.subr.bf16.mxu0 %v921
  %1163 = vmatpush1.bf16.msra.mxu0 %v920
  %1164 = vmatprep.subr.bf16.mxu0 0
  %1165 = vmatpush1.bf16.msra.mxu0 0
  %1166 = vmatprep.subr.bf16.mxu0 0
  %1167 = vmatpush1.bf16.msra.mxu0 0
  %1168 = vmatprep.subr.bf16.mxu0 0
  %1169 = vmatpush1.bf16.msra.mxu0 0
  %1170 = vmatprep.subr.bf16.mxu0 0
  %1171 = vmatpush1.bf16.msra.mxu0 0
  %1172 = vmatprep.subr.bf16.mxu0 0
  %1173 = vmatpush1.bf16.msra.mxu0 0
  %1174 = vmatprep.subr.bf16.mxu0 0
  %1175 = vmatpush1.bf16.msra.mxu0 0
  %1176 = vmatprep.subr.bf16.mxu0 0
  %1177 = vmatpush1.bf16.msra.mxu0 0
  %1178 = vmatprep.subr.bf16.mxu0 0
  %1179 = vmatpush1.bf16.msra.mxu0 0
  %1180 = vmatprep.mubr.bf16.mxu0 0
  %1181 = vmatmul.mubr.bf16.gmra.mrb[0].mxu0 %v513
  %v1182 = vpop.f32.mrb[0].mxu0
  %v1183 = vadd.f32 %v1110, %v1182
  %v1184 = vpop.f32.mrb[0].mxu0
  %v1185 = vadd.f32 %v1112, %v1184
  %v1186 = vpop.f32.mrb[0].mxu0
  %v1187 = vadd.f32 %v1114, %v1186
  %v1188 = vpop.f32.mrb[0].mxu0
  %v1189 = vadd.f32 %v1116, %v1188
  %1190 = vmatprep.mubr.bf16.mxu0 0
  %1191 = vmatmul.mubr.bf16.gmra.mrb[0].mxu0 %v514
  %v1192 = vpop.f32.mrb[0].mxu0
  %v1193 = vadd.f32 %v1120, %v1192
  %v1194 = vpop.f32.mrb[0].mxu0
  %v1195 = vadd.f32 %v1122, %v1194
  %v1196 = vpop.f32.mrb[0].mxu0
  %v1197 = vadd.f32 %v1124, %v1196
  %v1198 = vpop.f32.mrb[0].mxu0
  %v1199 = vadd.f32 %v1126, %v1198
  %1200 = vmatprep.mubr.bf16.mxu0 0
  %1201 = vmatmul.mubr.bf16.gmra.mrb[0].mxu0 %v519
  %v1202 = vpop.f32.mrb[0].mxu0
  %v1203 = vadd.f32 %v1130, %v1202
  %v1204 = vpop.f32.mrb[0].mxu0
  %v1205 = vadd.f32 %v1132, %v1204
  %v1206 = vpop.f32.mrb[0].mxu0
  %v1207 = vadd.f32 %v1134, %v1206
  %v1208 = vpop.f32.mrb[0].mxu0
  %v1209 = vadd.f32 %v1136, %v1208
  %1210 = vmatprep.mubr.bf16.mxu0 0
  %1211 = vmatmul.mubr.bf16.gmra.mrb[0].mxu0 %v521
  %v1212 = vpop.f32.mrb[0].mxu0
  %v1213 = vadd.f32 %v1140, %v1212
  %v1214 = vpop.f32.mrb[0].mxu0
  %v1215 = vadd.f32 %v1142, %v1214
  %v1216 = vpop.f32.mrb[0].mxu0
  %v1217 = vadd.f32 %v1144, %v1216
  %v1218 = vpop.f32.mrb[0].mxu0
  %v1219 = vadd.f32 %v1146, %v1218
  %1220 = vdwg.mxu0
  %v1221 = vmax.f32 %v1183, %v1185
  %v1222 = vmax.f32 %v1187, %v1189
  %v1223 = vmax.f32 %v1193, %v1195
  %v1224 = vmax.f32 %v1197, %v1199
  %v1225 = vmax.f32 %v1203, %v1205
  %v1226 = vmax.f32 %v1207, %v1209
  %v1227 = vmax.f32 %v1213, %v1215
  %v1228 = vmax.f32 %v1217, %v1219
  %v1229 = vmax.f32 %v1221, %v1222
  %v1230 = vld [vmem:[%s5] sm:$0x1]
  %v1232 = vlaneseq
  %v1233 = vshrl.u32 %v1232, 7
  %v1234 = vsub.s32 0, %v1233
  %v1235 = vrot.slane %v1230, %v1234
  %v1237 = vadd.f32 %v1229, %v1235
  %v1238 = vmax.f32 %v1237, 0.0
  %v1239 = vpack.c.bf16 %v1238, %v1238
  %v1240 = vmax.f32 %v1223, %v1224
  %v1241 = vadd.f32 %v1240, %v1235
  %v1242 = vmax.f32 %v1241, 0.0
  %v1243 = vpack.c.bf16 %v1242, %v1242
  %v1244 = vmax.f32 %v1225, %v1226
  %v1245 = vadd.f32 %v1244, %v1235
  %v1246 = vmax.f32 %v1245, 0.0
  %v1247 = vpack.c.bf16 %v1246, %v1246
  %v1248 = vmax.f32 %v1227, %v1228
  %v1249 = vadd.f32 %v1248, %v1235
  %v1250 = vmax.f32 %v1249, 0.0
  %v1251 = vpack.c.bf16 %v1250, %v1250
  %v1252 = vld [vmem:[%s6] sm:$0xf]
  %v1253 = vld [vmem:[%s6 + $0x4] sm:$0xf]
  %v1254 = vld [vmem:[%s6 + $0x8] sm:$0xf]
  %v1255 = vld [vmem:[%s6 + $0xc] sm:$0xf]
  %v1256 = vld [vmem:[%s6 + $0x10] sm:$0xf]
  %v1257 = vld [vmem:[%s6 + $0x14] sm:$0xf]
  %v1258 = vld [vmem:[%s6 + $0x18] sm:$0xf]
  %v1259 = vld [vmem:[%s6 + $0x1c] sm:$0xf]
  %v1260 = vld [vmem:[%s6 + $0x20] sm:$0xf]
  %v1261 = vld [vmem:[%s6 + $0x24] sm:$0xf]
  %v1262 = vld [vmem:[%s6 + $0x28] sm:$0xf]
  %v1263 = vld [vmem:[%s6 + $0x2c] sm:$0xf]
  %v1264 = vld [vmem:[%s6 + $0x30] sm:$0xf]
  %v1265 = vld [vmem:[%s6 + $0x34] sm:$0xf]
  %v1266 = vld [vmem:[%s6 + $0x38] sm:$0xf]
  %v1267 = vld [vmem:[%s6 + $0x3c] sm:$0xf]
  %v1268 = vld [vmem:[%s6 + $0x40] sm:$0xf]
  %v1269 = vld [vmem:[%s6 + $0x44] sm:$0xf]
  %v1270 = vld [vmem:[%s6 + $0x48] sm:$0xf]
  %v1271 = vld [vmem:[%s6 + $0x4c] sm:$0xf]
  %v1272 = vld [vmem:[%s6 + $0x50] sm:$0xf]
  %v1273 = vld [vmem:[%s6 + $0x54] sm:$0xf]
  %v1274 = vld [vmem:[%s6 + $0x58] sm:$0xf]
  %v1275 = vld [vmem:[%s6 + $0x5c] sm:$0xf]
  %v1276 = vld [vmem:[%s6 + $0x60] sm:$0xf]
  %v1277 = vld [vmem:[%s6 + $0x64] sm:$0xf]
  %v1278 = vld [vmem:[%s6 + $0x68] sm:$0xf]
  %v1279 = vld [vmem:[%s6 + $0x6c] sm:$0xf]
  %v1280 = vld [vmem:[%s6 + $0x70] sm:$0xf]
  %v1281 = vld [vmem:[%s6 + $0x74] sm:$0xf]
  %v1282 = vld [vmem:[%s6 + $0x78] sm:$0xf]
  %v1283 = vld [vmem:[%s6 + $0x7c] sm:$0xf]
  %v1284 = vld [vmem:[%s6 + $0x80] sm:$0xf]
  %v1285 = vld [vmem:[%s6 + $0x84] sm:$0xf]
  %v1286 = vld [vmem:[%s6 + $0x88] sm:$0xf]
  %v1287 = vld [vmem:[%s6 + $0x8c] sm:$0xf]
  %v1288 = vld [vmem:[%s6 + $0x90] sm:$0xf]
  %v1289 = vld [vmem:[%s6 + $0x94] sm:$0xf]
  %v1290 = vld [vmem:[%s6 + $0x98] sm:$0xf]
  %v1291 = vld [vmem:[%s6 + $0x9c] sm:$0xf]
  %v1292 = vld [vmem:[%s6 + $0xa0] sm:$0xf]
  %v1293 = vld [vmem:[%s6 + $0xa4] sm:$0xf]
  %v1294 = vld [vmem:[%s6 + $0xa8] sm:$0xf]
  %v1295 = vld [vmem:[%s6 + $0xac] sm:$0xf]
  %v1296 = vld [vmem:[%s6 + $0xb0] sm:$0xf]
  %v1297 = vld [vmem:[%s6 + $0xb4] sm:$0xf]
  %v1298 = vld [vmem:[%s6 + $0xb8] sm:$0xf]
  %v1299 = vld [vmem:[%s6 + $0xbc] sm:$0xf]
  %v1300 = vld [vmem:[%s6 + $0xc0] sm:$0xf]
  %v1301 = vld [vmem:[%s6 + $0xc4] sm:$0xf]
  %v1302 = vld [vmem:[%s6 + $0xc8] sm:$0xf]
  %v1303 = vld [vmem:[%s6 + $0xcc] sm:$0xf]
  %v1304 = vld [vmem:[%s6 + $0xd0] sm:$0xf]
  %v1305 = vld [vmem:[%s6 + $0xd4] sm:$0xf]
  %v1306 = vld [vmem:[%s6 + $0xd8] sm:$0xf]
  %v1307 = vld [vmem:[%s6 + $0xdc] sm:$0xf]
  %v1308 = vld [vmem:[%s6 + $0xe0] sm:$0xf]
  %v1309 = vld [vmem:[%s6 + $0xe4] sm:$0xf]
  %v1310 = vld [vmem:[%s6 + $0xe8] sm:$0xf]
  %v1311 = vld [vmem:[%s6 + $0xec] sm:$0xf]
  %v1312 = vld [vmem:[%s6 + $0xf0] sm:$0xf]
  %v1313 = vld [vmem:[%s6 + $0xf4] sm:$0xf]
  %v1314 = vld [vmem:[%s6 + $0xf8] sm:$0xf]
  %v1315 = vld [vmem:[%s6 + $0xfc] sm:$0xf]
  %v1316 = vld [vmem:[%s7] sm:$0x1]
  %v1318 = vlaneseq
  %v1319 = vshrl.u32 %v1318, 7
  %v1320 = vsub.s32 0, %v1319
  %v1321 = vrot.slane %v1316, %v1320
  %v1387 = vunpack.c.l.b16 %v1252
  %v1388 = vunpack.c.l.b16 %v1253
  %v1389 = vunpack.c.l.b16 %v1254
  %v1390 = vunpack.c.l.b16 %v1255
  %v1391 = vunpack.c.l.b16 %v1256
  %v1392 = vunpack.c.l.b16 %v1257
  %v1393 = vunpack.c.l.b16 %v1258
  %v1394 = vunpack.c.l.b16 %v1259
  %v1395 = vunpack.c.l.b16 %v1260
  %v1396 = vunpack.c.l.b16 %v1261
  %v1397 = vunpack.c.l.b16 %v1262
  %v1398 = vunpack.c.l.b16 %v1263
  %v1399 = vunpack.c.l.b16 %v1264
  %v1400 = vunpack.c.l.b16 %v1265
  %v1401 = vunpack.c.l.b16 %v1266
  %v1402 = vunpack.c.l.b16 %v1267
  %v1403 = vunpack.c.l.b16 %v1268
  %v1404 = vunpack.c.l.b16 %v1269
  %v1405 = vunpack.c.l.b16 %v1270
  %v1406 = vunpack.c.l.b16 %v1271
  %v1407 = vunpack.c.l.b16 %v1272
  %v1408 = vunpack.c.l.b16 %v1273
  %v1409 = vunpack.c.l.b16 %v1274
  %v1410 = vunpack.c.l.b16 %v1275
  %v1411 = vunpack.c.l.b16 %v1276
  %v1412 = vunpack.c.l.b16 %v1277
  %v1413 = vunpack.c.l.b16 %v1278
  %v1414 = vunpack.c.l.b16 %v1279
  %v1415 = vunpack.c.l.b16 %v1280
  %v1416 = vunpack.c.l.b16 %v1281
  %v1417 = vunpack.c.l.b16 %v1282
  %v1418 = vunpack.c.l.b16 %v1283
  %v1419 = vunpack.c.l.b16 %v1284
  %v1420 = vunpack.c.l.b16 %v1285
  %v1421 = vunpack.c.l.b16 %v1286
  %v1422 = vunpack.c.l.b16 %v1287
  %v1423 = vunpack.c.l.b16 %v1288
  %v1424 = vunpack.c.l.b16 %v1289
  %v1425 = vunpack.c.l.b16 %v1290
  %v1426 = vunpack.c.l.b16 %v1291
  %v1427 = vunpack.c.l.b16 %v1292
  %v1428 = vunpack.c.l.b16 %v1293
  %v1429 = vunpack.c.l.b16 %v1294
  %v1430 = vunpack.c.l.b16 %v1295
  %v1431 = vunpack.c.l.b16 %v1296
  %v1432 = vunpack.c.l.b16 %v1297
  %v1433 = vunpack.c.l.b16 %v1298
  %v1434 = vunpack.c.l.b16 %v1299
  %v1435 = vunpack.c.l.b16 %v1300
  %v1436 = vunpack.c.l.b16 %v1301
  %v1437 = vunpack.c.l.b16 %v1302
  %v1438 = vunpack.c.l.b16 %v1303
  %v1439 = vunpack.c.l.b16 %v1304
  %v1440 = vunpack.c.l.b16 %v1305
  %v1441 = vunpack.c.l.b16 %v1306
  %v1442 = vunpack.c.l.b16 %v1307
  %v1443 = vunpack.c.l.b16 %v1308
  %v1444 = vunpack.c.l.b16 %v1309
  %v1445 = vunpack.c.l.b16 %v1310
  %v1446 = vunpack.c.l.b16 %v1311
  %v1447 = vunpack.c.l.b16 %v1312
  %v1448 = vunpack.c.l.b16 %v1313
  %v1449 = vunpack.c.l.b16 %v1314
  %v1450 = vunpack.c.l.b16 %v1315
  %v1451 = vpack.c.b16 %v1388, %v1387
  %v1452 = vpack.c.b16 %v1390, %v1389
  %v1453 = vpack.c.b16 %v1392, %v1391
  %v1454 = vpack.c.b16 %v1394, %v1393
  %v1455 = vpack.c.b16 %v1396, %v1395
  %v1456 = vpack.c.b16 %v1398, %v1397
  %v1457 = vpack.c.b16 %v1400, %v1399
  %v1458 = vpack.c.b16 %v1402, %v1401
  %v1459 = vpack.c.b16 %v1404, %v1403
  %v1460 = vpack.c.b16 %v1406, %v1405
  %v1461 = vpack.c.b16 %v1408, %v1407
  %v1462 = vpack.c.b16 %v1410, %v1409
  %v1463 = vpack.c.b16 %v1412, %v1411
  %v1464 = vpack.c.b16 %v1414, %v1413
  %v1465 = vpack.c.b16 %v1416, %v1415
  %v1466 = vpack.c.b16 %v1418, %v1417
  %v1467 = vpack.c.b16 %v1420, %v1419
  %v1468 = vpack.c.b16 %v1422, %v1421
  %v1469 = vpack.c.b16 %v1424, %v1423
  %v1470 = vpack.c.b16 %v1426, %v1425
  %v1471 = vpack.c.b16 %v1428, %v1427
  %v1472 = vpack.c.b16 %v1430, %v1429
  %v1473 = vpack.c.b16 %v1432, %v1431
  %v1474 = vpack.c.b16 %v1434, %v1433
  %v1475 = vpack.c.b16 %v1436, %v1435
  %v1476 = vpack.c.b16 %v1438, %v1437
  %v1477 = vpack.c.b16 %v1440, %v1439
  %v1478 = vpack.c.b16 %v1442, %v1441
  %v1479 = vpack.c.b16 %v1444, %v1443
  %v1480 = vpack.c.b16 %v1446, %v1445
  %v1481 = vpack.c.b16 %v1448, %v1447
  %v1482 = vpack.c.b16 %v1450, %v1449
  %1515 = vmatprep.subr.bf16.mxu0 0
  %1516 = vmatpush1.bf16.msra.mxu0 %v1451
  %1517 = vmatprep.subr.bf16.mxu0 0
  %1518 = vmatpush1.bf16.msra.mxu0 %v1452
  %1519 = vmatprep.subr.bf16.mxu0 0
  %1520 = vmatpush1.bf16.msra.mxu0 %v1453
  %1521 = vmatprep.subr.bf16.mxu0 0
  %1522 = vmatpush1.bf16.msra.mxu0 %v1454
  %1523 = vmatprep.subr.bf16.mxu0 0
  %1524 = vmatpush1.bf16.msra.mxu0 %v1455
  %1525 = vmatprep.subr.bf16.mxu0 0
  %1526 = vmatpush1.bf16.msra.mxu0 %v1456
  %1527 = vmatprep.subr.bf16.mxu0 0
  %1528 = vmatpush1.bf16.msra.mxu0 %v1457
  %1529 = vmatprep.subr.bf16.mxu0 0
  %1530 = vmatpush1.bf16.msra.mxu0 %v1458
  %1531 = vmatprep.subr.bf16.mxu0 0
  %1532 = vmatpush1.bf16.msra.mxu0 %v1459
  %1533 = vmatprep.subr.bf16.mxu0 0
  %1534 = vmatpush1.bf16.msra.mxu0 %v1460
  %1535 = vmatprep.subr.bf16.mxu0 0
  %1536 = vmatpush1.bf16.msra.mxu0 %v1461
  %1537 = vmatprep.subr.bf16.mxu0 0
  %1538 = vmatpush1.bf16.msra.mxu0 %v1462
  %1539 = vmatprep.subr.bf16.mxu0 0
  %1540 = vmatpush1.bf16.msra.mxu0 %v1463
  %1541 = vmatprep.subr.bf16.mxu0 0
  %1542 = vmatpush1.bf16.msra.mxu0 %v1464
  %1543 = vmatprep.subr.bf16.mxu0 0
  %1544 = vmatpush1.bf16.msra.mxu0 %v1465
  %1545 = vmatprep.subr.bf16.mxu0 0
  %1546 = vmatpush1.bf16.msra.mxu0 %v1466
  %1547 = vmatprep.mubr.bf16.mxu0 %v1243
  %1548 = vmatmul.mubr.bf16.gmra.mrb[0].mxu0 %v1239
  %v1549 = vpop.f32.mrb[0].mxu0
  %v1550 = vadd.f32 %v1321, %v1549
  %v1551 = vpop.f32.mrb[0].mxu0
  %v1552 = vpop.f32.mrb[0].mxu0
  %v1553 = vpop.f32.mrb[0].mxu0
  %1554 = vdwg.mxu0
  %1555 = vmatprep.subr.bf16.mxu0 0
  %1556 = vmatpush1.bf16.msra.mxu0 %v1467
  %1557 = vmatprep.subr.bf16.mxu0 0
  %1558 = vmatpush1.bf16.msra.mxu0 %v1468
  %1559 = vmatprep.subr.bf16.mxu0 0
  %1560 = vmatpush1.bf16.msra.mxu0 %v1469
  %1561 = vmatprep.subr.bf16.mxu0 0
  %1562 = vmatpush1.bf16.msra.mxu0 %v1470
  %1563 = vmatprep.subr.bf16.mxu0 0
  %1564 = vmatpush1.bf16.msra.mxu0 %v1471
  %1565 = vmatprep.subr.bf16.mxu0 0
  %1566 = vmatpush1.bf16.msra.mxu0 %v1472
  %1567 = vmatprep.subr.bf16.mxu0 0
  %1568 = vmatpush1.bf16.msra.mxu0 %v1473
  %1569 = vmatprep.subr.bf16.mxu0 0
  %1570 = vmatpush1.bf16.msra.mxu0 %v1474
  %1571 = vmatprep.subr.bf16.mxu0 0
  %1572 = vmatpush1.bf16.msra.mxu0 %v1475
  %1573 = vmatprep.subr.bf16.mxu0 0
  %1574 = vmatpush1.bf16.msra.mxu0 %v1476
  %1575 = vmatprep.subr.bf16.mxu0 0
  %1576 = vmatpush1.bf16.msra.mxu0 %v1477
  %1577 = vmatprep.subr.bf16.mxu0 0
  %1578 = vmatpush1.bf16.msra.mxu0 %v1478
  %1579 = vmatprep.subr.bf16.mxu0 0
  %1580 = vmatpush1.bf16.msra.mxu0 %v1479
  %1581 = vmatprep.subr.bf16.mxu0 0
  %1582 = vmatpush1.bf16.msra.mxu0 %v1480
  %1583 = vmatprep.subr.bf16.mxu0 0
  %1584 = vmatpush1.bf16.msra.mxu0 %v1481
  %1585 = vmatprep.subr.bf16.mxu0 0
  %1586 = vmatpush1.bf16.msra.mxu0 %v1482
  %1587 = vmatprep.mubr.bf16.mxu0 %v1251
  %1588 = vmatmul.mubr.bf16.gmra.mrb[0].mxu0 %v1247
  %v1589 = vpop.f32.mrb[0].mxu0
  %v1590 = vadd.f32 %v1550, %v1589
  %v1591 = vpop.f32.mrb[0].mxu0
  %v1592 = vpop.f32.mrb[0].mxu0
  %v1593 = vpop.f32.mrb[0].mxu0
  %1594 = vdwg.mxu0
  %v1595 = vmax.f32 %v1590, 0.0
  %v1596 = vpack.c.bf16 %v1595, %v1595
  %v1597 = vld [vmem:[%s8] sm:$0xf]
  %v1598 = vld [vmem:[%s8 + $0x4] sm:$0xf]
  %v1599 = vld [vmem:[%s8 + $0x8] sm:$0xf]
  %v1600 = vld [vmem:[%s8 + $0xc] sm:$0xf]
  %v1601 = vld [vmem:[%s8 + $0x10] sm:$0xf]
  %v1602 = vld [vmem:[%s8 + $0x14] sm:$0xf]
  %v1603 = vld [vmem:[%s8 + $0x18] sm:$0xf]
  %v1604 = vld [vmem:[%s8 + $0x1c] sm:$0xf]
  %v1605 = vld [vmem:[%s9] sm:$0x1]
  %v1607 = vlaneseq
  %v1608 = vshrl.u32 %v1607, 7
  %v1609 = vsub.s32 0, %v1608
  %v1610 = vrot.slane %v1605, %v1609
  %v1620 = vunpack.c.l.b16 %v1597
  %v1621 = vunpack.c.l.b16 %v1598
  %v1622 = vunpack.c.l.b16 %v1599
  %v1623 = vunpack.c.l.b16 %v1600
  %v1624 = vunpack.c.l.b16 %v1601
  %v1625 = vunpack.c.l.b16 %v1602
  %v1626 = vunpack.c.l.b16 %v1603
  %v1627 = vunpack.c.l.b16 %v1604
  %v1628 = vpack.c.b16 %v1621, %v1620
  %v1629 = vpack.c.b16 %v1623, %v1622
  %v1630 = vpack.c.b16 %v1625, %v1624
  %v1631 = vpack.c.b16 %v1627, %v1626
  %vm1636 = vcmask 523264
  %v1638 = vsel %vm1636, %v1596, 0
  %1640 = vmatprep.subr.bf16.mxu0 0
  %1641 = vmatpush1.bf16.msra.mxu0 %v1628
  %1642 = vmatprep.subr.bf16.mxu0 0
  %1643 = vmatpush1.bf16.msra.mxu0 %v1629
  %1644 = vmatprep.subr.bf16.mxu0 0
  %1645 = vmatpush1.bf16.msra.mxu0 %v1630
  %1646 = vmatprep.subr.bf16.mxu0 0
  %1647 = vmatpush1.bf16.msra.mxu0 %v1631
  %1648 = vmatprep.subr.bf16.mxu0 0
  %1649 = vmatpush1.bf16.msra.mxu0 0
  %1650 = vmatprep.subr.bf16.mxu0 0
  %1651 = vmatpush1.bf16.msra.mxu0 0
  %1652 = vmatprep.subr.bf16.mxu0 0
  %1653 = vmatpush1.bf16.msra.mxu0 0
  %1654 = vmatprep.subr.bf16.mxu0 0
  %1655 = vmatpush1.bf16.msra.mxu0 0
  %1656 = vmatprep.subr.bf16.mxu0 0
  %1657 = vmatpush1.bf16.msra.mxu0 0
  %1658 = vmatprep.subr.bf16.mxu0 0
  %1659 = vmatpush1.bf16.msra.mxu0 0
  %1660 = vmatprep.subr.bf16.mxu0 0
  %1661 = vmatpush1.bf16.msra.mxu0 0
  %1662 = vmatprep.subr.bf16.mxu0 0
  %1663 = vmatpush1.bf16.msra.mxu0 0
  %1664 = vmatprep.subr.bf16.mxu0 0
  %1665 = vmatpush1.bf16.msra.mxu0 0
  %1666 = vmatprep.subr.bf16.mxu0 0
  %1667 = vmatpush1.bf16.msra.mxu0 0
  %1668 = vmatprep.subr.bf16.mxu0 0
  %1669 = vmatpush1.bf16.msra.mxu0 0
  %1670 = vmatprep.subr.bf16.mxu0 0
  %1671 = vmatpush1.bf16.msra.mxu0 0
  %1672 = vmatprep.mubr.bf16.mxu0 0
  %1673 = vmatmul.mubr.bf16.gmra.mrb[0].mxu0 %v1638
  %v1674 = vpop.f32.mrb[0].mxu0
  %v1675 = vadd.f32 %v1610, %v1674
  %v1676 = vpop.f32.mrb[0].mxu0
  %v1677 = vpop.f32.mrb[0].mxu0
  %v1678 = vpop.f32.mrb[0].mxu0
  %1679 = vdwg.mxu0
  %1680 = vst [vmem:[%s10] sm:$0xff] %v1675
  // Predicated region
  $region42: #{_lambda_.1} parent=0 // pred_check
    _
  $region43: #{_lambda_.1} parent=0 // pred_check_branch
    %1682 = sbr.rel (0) target = $region45
  $region44: #{_lambda_.1} parent=0 // pred_region
    _
  $region45: #{_lambda_.1} parent=0 // pred_fallthru
    _
  // Predicated region
  $region46: #{_lambda_.1} parent=0 // pred_check
    _
  $region47: #{_lambda_.1} parent=0 // pred_check_branch
    %1684 = sbr.rel (0) target = $region49
  $region48: #{_lambda_.1} parent=0 // pred_region
    _
  $region49: #{_lambda_.1} parent=0 // pred_fallthru
    _

</llo_original>
